<compile_context>
chip_gen: v6e
topology: v6e:2x2x1
jax: 0.10.0
libtpu: 0.0.40
codegen_flags: <defaults>
</compile_context>

<pallas_src>
import functools

import jax
import jax.numpy as jnp
import numpy as np
from jax.experimental import pallas as pl
from jax.experimental.pallas import tpu as pltpu


def _listephens_fwd_kernel(rho_ref, h_ref, hcols_ref, pi_ref, *rest,
                           mu, target_l, use_mask, unroll):
    if use_mask:
        mask_ref, alpha_ref = rest
        mask = mask_ref[...]
    else:
        (alpha_ref,) = rest
        mask = None

    one_minus_mu = jnp.float32(1.0 - mu)
    mu_f = jnp.float32(mu)
    pi = pi_ref[...]                                    # (N, tn), hoisted out of loop

    def emission(l):
        # theta[i, j] = (1 - mu) if h[l, i] == h[l, j] else mu
        hrow = h_ref[pl.ds(l, 1), :]                    # (1, tn): h[l, j] along lanes
        hcol = hcols_ref[l]                             # (N, 1):  h[l, i] along sublanes
        return jnp.where(hcol == hrow, one_minus_mu, mu_f)   # broadcast -> (N, tn)

    # l == 0 : alpha = theta(0) * pi   (no diagonal zeroing at l == 0, as in PyTorch)
    alpha0 = emission(0) * pi

    def body(l, alpha):
        theta = emission(l)
        colsum = jnp.sum(alpha, axis=0, keepdims=True)        # (1, tn) column sums
        inv = pl.reciprocal(colsum, approx=True)              # EUP, off the VALU chain
        inv = inv * (2.0 - colsum * inv)                       # one Newton refinement
        rho_l = rho_ref[l - 1]                                  # scalar from SMEM
        alpha_new = theta * (alpha * ((1.0 - rho_l) * inv) + rho_l * pi)
        if use_mask:
            alpha_new = alpha_new * mask                        # fill_diagonal_(0)
        return alpha_new

    alpha = jax.lax.fori_loop(1, target_l + 1, body, alpha0, unroll=unroll)
    alpha_ref[...] = alpha


@functools.partial(jax.jit, static_argnames=("mu", "target_l", "zero_diag_pi"))
def listephens_forward(h, pi, rho, mu, target_l, zero_diag_pi=True):
    """Pallas implementation of LiStephens.forward(target_l). Returns alpha (N, N).

    zero_diag_pi=True asserts pi has a zero diagonal (standard Li-Stephens pi):
    the in-kernel diagonal mask is then provably redundant and is dropped.
    """
    L, N = h.shape
    target_l = int(target_l)
    if not (0 <= target_l <= L - 1):
        raise ValueError(f"target_l={target_l} must lie in [0, L-1={L - 1}]")

    h32 = h.astype(jnp.float32)                  # (L, N)
    h_cols = h32[:, :, None]                     # (L, N, 1): per-site column view
    pi32 = pi.astype(jnp.float32)
    rho32 = rho.astype(jnp.float32)
    if rho32.shape[0] == 0:                      # L == 1 corner: keep SMEM non-empty
        rho32 = jnp.zeros((1,), jnp.float32)

    # Lane (column) tiling: per-column recurrences are independent -> "parallel"
    # grid axis (sharded across TensorCores on v7x; single block at N=128).
    tn = 128 if N % 128 == 0 else N
    grid = (N // tn,)
    use_mask = not zero_diag_pi
    unroll = True if target_l <= 8 else 2

    kernel = functools.partial(
        _listephens_fwd_kernel,
        mu=float(mu), target_l=target_l, use_mask=use_mask, unroll=unroll)

    in_specs = [
        pl.BlockSpec(memory_space=pltpu.MemorySpace.SMEM),   # rho    (L-1,) scalars
        pl.BlockSpec((L, tn), lambda j: (0, j)),             # h      (L, N) column tile
        pl.BlockSpec(memory_space=pltpu.MemorySpace.VMEM),   # h_cols (L, N, 1), whole
        pl.BlockSpec((N, tn), lambda j: (0, j)),             # pi     (N, N) column tile
    ]
    args = [rho32, h32, h_cols, pi32]
    if use_mask:
        mask = 1.0 - jnp.eye(N, dtype=jnp.float32)
        in_specs.append(pl.BlockSpec((N, tn), lambda j: (0, j)))
        args.append(mask)

    return pl.pallas_call(
        kernel,
        out_shape=jax.ShapeDtypeStruct((N, N), jnp.float32),
        grid=grid,
        in_specs=in_specs,
        out_specs=pl.BlockSpec((N, tn), lambda j: (0, j)),
        compiler_params=pltpu.CompilerParams(
            dimension_semantics=("parallel",),
            vmem_limit_bytes=32 * 1024 * 1024),
    )(*args)


def reference_forward(h, pi, rho, mu, target_l):
    """Pure-JAX reference mirroring the PyTorch module exactly."""
    N = h.shape[1]
    diag = jnp.eye(N, dtype=bool)

    def theta(l):
        hl = h[l]
        return jnp.where(hl[:, None] == hl[None, :], 1.0 - mu, mu).astype(jnp.float32)

    alpha = theta(0) * pi
    for l in range(1, target_l + 1):
        th = theta(l)
        alpha_norm = alpha / jnp.sum(alpha, axis=0)
        alpha = (1.0 - rho[l - 1]) * alpha_norm + rho[l - 1] * pi
        alpha = th * alpha
        alpha = jnp.where(diag, 0.0, alpha)
    return alpha


if __name__ == "__main__":
    # Deterministic, in-script "parameters" (synthetic — no checkpoint load).
    L, N = 8, 128
    target_l = 6
    mu = 0.001
    gamma = 1.0
    N_est = 1000.0

    key = jax.random.PRNGKey(0)
    kh, km = jax.random.split(key)

    # Binary haplotype panel h: (L, N)
    h = jax.random.bernoulli(kh, p=0.5, shape=(L, N)).astype(jnp.float32)
    # Genetic distances between adjacent sites: (L-1,)
    m = jax.random.uniform(km, (L - 1,), minval=1e-4, maxval=1e-2, dtype=jnp.float32)

    # rho = -expm1(-N_e * m**gamma), N_e = 4 * N_est / N   (as in __init__)
    N_e = 4.0 * N_est / N
    rho = -jnp.expm1(-N_e * jnp.power(m, gamma)).astype(jnp.float32)

    # pi = (1 - eye(N)) / (N - 1)   (zero diagonal -> mask-free kernel path)
    pi = ((1.0 - jnp.eye(N, dtype=jnp.float32)) / (N - 1)).astype(jnp.float32)

    alpha = listephens_forward(h, pi, rho, mu=mu, target_l=target_l,
                               zero_diag_pi=True)
    alpha = jax.block_until_ready(alpha)

    alpha_ref = jax.block_until_ready(reference_forward(h, pi, rho, mu, target_l))
    # alpha entries are O(1e-2); atol=1e-6 (~1e-4 relative) covers the approx
    # reciprocal + single Newton step vs. the reference's exact divide, plus the
    # (1-rho)-folded reassociation (a few ulp per site).
    np.testing.assert_allclose(np.asarray(alpha), np.asarray(alpha_ref),
                               rtol=1e-5, atol=1e-6)

    print("KERNEL_OK")
</pallas_src>

<mosaic_0001>
module attributes {stable_mosaic.version = 11 : i64} {
  func.func @_listephens_fwd_kernel(%arg0: i32, %arg1: memref<7xf32, #tpu.memory_space<smem>>, %arg2: memref<8x128xf32, #tpu.memory_space<vmem>>, %arg3: memref<8x128x1xf32, #tpu.memory_space<vmem>>, %arg4: memref<128x128xf32, #tpu.memory_space<vmem>>, %arg5: memref<128x128xf32, #tpu.memory_space<vmem>>) attributes {dimension_semantics = [#tpu.dimension_semantics<parallel>], iteration_bounds = array<i64: 1>, scalar_prefetch = 0 : i64, scratch_operands = 0 : i64, tpu.core_type = #tpu.core_type<tc>, window_params = [{transform_indices = @transform_0, window_bounds = array<i64: 7>}, {transform_indices = @transform_1, window_bounds = array<i64: 8, 128>}, {pipeline_mode = #tpu.pipeline_mode<synchronous>, transform_indices = @transform_2, window_bounds = array<i64: 8, 128, 1>}, {transform_indices = @transform_3, window_bounds = array<i64: 128, 128>}, {transform_indices = @transform_4, window_bounds = array<i64: 128, 128>}]} {
    %c0 = arith.constant 0 : index
    %c0_0 = arith.constant 0 : index
    %0 = vector.load %arg4[%c0, %c0_0] : memref<128x128xf32, #tpu.memory_space<vmem>>, vector<128x128xf32>
    %c0_1 = arith.constant 0 : index
    %c0_2 = arith.constant 0 : index
    %1 = vector.load %arg2[%c0_1, %c0_2] : memref<8x128xf32, #tpu.memory_space<vmem>>, vector<1x128xf32>
    %c0_3 = arith.constant 0 : index
    %c0_4 = arith.constant 0 : index
    %c0_5 = arith.constant 0 : index
    %2 = vector.load %arg3[%c0_3, %c0_4, %c0_5] : memref<8x128x1xf32, #tpu.memory_space<vmem>>, vector<1x128x1xf32>
    %3 = vector.shape_cast %2 : vector<1x128x1xf32> to vector<128x1xf32>
    %4 = vector.broadcast %3 : vector<128x1xf32> to vector<128x128xf32>
    %5 = vector.broadcast %1 : vector<1x128xf32> to vector<128x128xf32>
    %6 = arith.cmpf oeq, %4, %5 : vector<128x128xf32>
    %cst = arith.constant 9.990000e-01 : f32
    %cst_6 = arith.constant 1.000000e-03 : f32
    %7 = vector.broadcast %cst : f32 to vector<128x128xf32>
    %8 = vector.broadcast %cst_6 : f32 to vector<128x128xf32>
    %9 = arith.select %6, %7, %8 : vector<128x128xi1>, vector<128x128xf32>
    %10 = arith.mulf %9, %0 : vector<128x128xf32>
    %cst_7 = arith.constant 9.990000e-01 : f32
    %cst_8 = arith.constant 1.000000e-03 : f32
    %c1_i32 = arith.constant 1 : i32
    %11 = arith.index_cast %c1_i32 : i32 to index
    %c0_9 = arith.constant 0 : index
    %12 = vector.load %arg2[%11, %c0_9] : memref<8x128xf32, #tpu.memory_space<vmem>>, vector<1x128xf32>
    %13 = arith.index_cast %c1_i32 : i32 to index
    %c0_10 = arith.constant 0 : index
    %c0_11 = arith.constant 0 : index
    %14 = vector.load %arg3[%13, %c0_10, %c0_11] : memref<8x128x1xf32, #tpu.memory_space<vmem>>, vector<1x128x1xf32>
    %15 = vector.shape_cast %14 : vector<1x128x1xf32> to vector<128x1xf32>
    %16 = vector.broadcast %15 : vector<128x1xf32> to vector<128x128xf32>
    %17 = vector.broadcast %12 : vector<1x128xf32> to vector<128x128xf32>
    %18 = arith.cmpf oeq, %16, %17 : vector<128x128xf32>
    %19 = vector.broadcast %cst_7 : f32 to vector<128x128xf32>
    %20 = vector.broadcast %cst_8 : f32 to vector<128x128xf32>
    %21 = arith.select %18, %19, %20 : vector<128x128xi1>, vector<128x128xf32>
    %cst_12 = arith.constant dense<0.000000e+00> : vector<128xf32>
    %22 = vector.multi_reduction <add>, %10, %cst_12 [0] : vector<128x128xf32> to vector<128xf32>
    %23 = vector.shape_cast %22 : vector<128xf32> to vector<1x128xf32>
    %24 = tpu.reciprocal %23 {approx = true} : vector<1x128xf32> -> vector<1x128xf32>
    %25 = arith.mulf %23, %24 : vector<1x128xf32>
    %cst_13 = arith.constant 2.000000e+00 : f32
    %26 = vector.broadcast %cst_13 : f32 to vector<1x128xf32>
    %27 = arith.subf %26, %25 : vector<1x128xf32>
    %28 = arith.mulf %24, %27 : vector<1x128xf32>
    %c1_i32_14 = arith.constant 1 : i32
    %29 = arith.subi %c1_i32, %c1_i32_14 : i32
    %30 = arith.index_cast %29 : i32 to index
    %31 = memref.load %arg1[%30] : memref<7xf32, #tpu.memory_space<smem>>
    %cst_15 = arith.constant 1.000000e+00 : f32
    %32 = arith.subf %cst_15, %31 : f32
    %33 = vector.broadcast %32 : f32 to vector<1x128xf32>
    %34 = arith.mulf %33, %28 : vector<1x128xf32>
    %35 = vector.broadcast %34 : vector<1x128xf32> to vector<128x128xf32>
    %36 = arith.mulf %10, %35 : vector<128x128xf32>
    %37 = vector.broadcast %31 : f32 to vector<128x128xf32>
    %38 = arith.mulf %37, %0 : vector<128x128xf32>
    %39 = arith.addf %36, %38 : vector<128x128xf32>
    %40 = arith.mulf %21, %39 : vector<128x128xf32>
    %c2_i32 = arith.constant 2 : i32
    %41 = arith.index_cast %c2_i32 : i32 to index
    %c0_16 = arith.constant 0 : index
    %42 = vector.load %arg2[%41, %c0_16] : memref<8x128xf32, #tpu.memory_space<vmem>>, vector<1x128xf32>
    %43 = arith.index_cast %c2_i32 : i32 to index
    %c0_17 = arith.constant 0 : index
    %c0_18 = arith.constant 0 : index
    %44 = vector.load %arg3[%43, %c0_17, %c0_18] : memref<8x128x1xf32, #tpu.memory_space<vmem>>, vector<1x128x1xf32>
    %45 = vector.shape_cast %44 : vector<1x128x1xf32> to vector<128x1xf32>
    %46 = vector.broadcast %45 : vector<128x1xf32> to vector<128x128xf32>
    %47 = vector.broadcast %42 : vector<1x128xf32> to vector<128x128xf32>
    %48 = arith.cmpf oeq, %46, %47 : vector<128x128xf32>
    %49 = vector.broadcast %cst_7 : f32 to vector<128x128xf32>
    %50 = vector.broadcast %cst_8 : f32 to vector<128x128xf32>
    %51 = arith.select %48, %49, %50 : vector<128x128xi1>, vector<128x128xf32>
    %cst_19 = arith.constant dense<0.000000e+00> : vector<128xf32>
    %52 = vector.multi_reduction <add>, %40, %cst_19 [0] : vector<128x128xf32> to vector<128xf32>
    %53 = vector.shape_cast %52 : vector<128xf32> to vector<1x128xf32>
    %54 = tpu.reciprocal %53 {approx = true} : vector<1x128xf32> -> vector<1x128xf32>
    %55 = arith.mulf %53, %54 : vector<1x128xf32>
    %cst_20 = arith.constant 2.000000e+00 : f32
    %56 = vector.broadcast %cst_20 : f32 to vector<1x128xf32>
    %57 = arith.subf %56, %55 : vector<1x128xf32>
    %58 = arith.mulf %54, %57 : vector<1x128xf32>
    %c1_i32_21 = arith.constant 1 : i32
    %59 = arith.subi %c2_i32, %c1_i32_21 : i32
    %60 = arith.index_cast %59 : i32 to index
    %61 = memref.load %arg1[%60] : memref<7xf32, #tpu.memory_space<smem>>
    %cst_22 = arith.constant 1.000000e+00 : f32
    %62 = arith.subf %cst_22, %61 : f32
    %63 = vector.broadcast %62 : f32 to vector<1x128xf32>
    %64 = arith.mulf %63, %58 : vector<1x128xf32>
    %65 = vector.broadcast %64 : vector<1x128xf32> to vector<128x128xf32>
    %66 = arith.mulf %40, %65 : vector<128x128xf32>
    %67 = vector.broadcast %61 : f32 to vector<128x128xf32>
    %68 = arith.mulf %67, %0 : vector<128x128xf32>
    %69 = arith.addf %66, %68 : vector<128x128xf32>
    %70 = arith.mulf %51, %69 : vector<128x128xf32>
    %c3_i32 = arith.constant 3 : i32
    %71 = arith.index_cast %c3_i32 : i32 to index
    %c0_23 = arith.constant 0 : index
    %72 = vector.load %arg2[%71, %c0_23] : memref<8x128xf32, #tpu.memory_space<vmem>>, vector<1x128xf32>
    %73 = arith.index_cast %c3_i32 : i32 to index
    %c0_24 = arith.constant 0 : index
    %c0_25 = arith.constant 0 : index
    %74 = vector.load %arg3[%73, %c0_24, %c0_25] : memref<8x128x1xf32, #tpu.memory_space<vmem>>, vector<1x128x1xf32>
    %75 = vector.shape_cast %74 : vector<1x128x1xf32> to vector<128x1xf32>
    %76 = vector.broadcast %75 : vector<128x1xf32> to vector<128x128xf32>
    %77 = vector.broadcast %72 : vector<1x128xf32> to vector<128x128xf32>
    %78 = arith.cmpf oeq, %76, %77 : vector<128x128xf32>
    %79 = vector.broadcast %cst_7 : f32 to vector<128x128xf32>
    %80 = vector.broadcast %cst_8 : f32 to vector<128x128xf32>
    %81 = arith.select %78, %79, %80 : vector<128x128xi1>, vector<128x128xf32>
    %cst_26 = arith.constant dense<0.000000e+00> : vector<128xf32>
    %82 = vector.multi_reduction <add>, %70, %cst_26 [0] : vector<128x128xf32> to vector<128xf32>
    %83 = vector.shape_cast %82 : vector<128xf32> to vector<1x128xf32>
    %84 = tpu.reciprocal %83 {approx = true} : vector<1x128xf32> -> vector<1x128xf32>
    %85 = arith.mulf %83, %84 : vector<1x128xf32>
    %cst_27 = arith.constant 2.000000e+00 : f32
    %86 = vector.broadcast %cst_27 : f32 to vector<1x128xf32>
    %87 = arith.subf %86, %85 : vector<1x128xf32>
    %88 = arith.mulf %84, %87 : vector<1x128xf32>
    %c1_i32_28 = arith.constant 1 : i32
    %89 = arith.subi %c3_i32, %c1_i32_28 : i32
    %90 = arith.index_cast %89 : i32 to index
    %91 = memref.load %arg1[%90] : memref<7xf32, #tpu.memory_space<smem>>
    %cst_29 = arith.constant 1.000000e+00 : f32
    %92 = arith.subf %cst_29, %91 : f32
    %93 = vector.broadcast %92 : f32 to vector<1x128xf32>
    %94 = arith.mulf %93, %88 : vector<1x128xf32>
    %95 = vector.broadcast %94 : vector<1x128xf32> to vector<128x128xf32>
    %96 = arith.mulf %70, %95 : vector<128x128xf32>
    %97 = vector.broadcast %91 : f32 to vector<128x128xf32>
    %98 = arith.mulf %97, %0 : vector<128x128xf32>
    %99 = arith.addf %96, %98 : vector<128x128xf32>
    %100 = arith.mulf %81, %99 : vector<128x128xf32>
    %c4_i32 = arith.constant 4 : i32
    %101 = arith.index_cast %c4_i32 : i32 to index
    %c0_30 = arith.constant 0 : index
    %102 = vector.load %arg2[%101, %c0_30] : memref<8x128xf32, #tpu.memory_space<vmem>>, vector<1x128xf32>
    %103 = arith.index_cast %c4_i32 : i32 to index
    %c0_31 = arith.constant 0 : index
    %c0_32 = arith.constant 0 : index
    %104 = vector.load %arg3[%103, %c0_31, %c0_32] : memref<8x128x1xf32, #tpu.memory_space<vmem>>, vector<1x128x1xf32>
    %105 = vector.shape_cast %104 : vector<1x128x1xf32> to vector<128x1xf32>
    %106 = vector.broadcast %105 : vector<128x1xf32> to vector<128x128xf32>
    %107 = vector.broadcast %102 : vector<1x128xf32> to vector<128x128xf32>
    %108 = arith.cmpf oeq, %106, %107 : vector<128x128xf32>
    %109 = vector.broadcast %cst_7 : f32 to vector<128x128xf32>
    %110 = vector.broadcast %cst_8 : f32 to vector<128x128xf32>
    %111 = arith.select %108, %109, %110 : vector<128x128xi1>, vector<128x128xf32>
    %cst_33 = arith.constant dense<0.000000e+00> : vector<128xf32>
    %112 = vector.multi_reduction <add>, %100, %cst_33 [0] : vector<128x128xf32> to vector<128xf32>
    %113 = vector.shape_cast %112 : vector<128xf32> to vector<1x128xf32>
    %114 = tpu.reciprocal %113 {approx = true} : vector<1x128xf32> -> vector<1x128xf32>
    %115 = arith.mulf %113, %114 : vector<1x128xf32>
    %cst_34 = arith.constant 2.000000e+00 : f32
    %116 = vector.broadcast %cst_34 : f32 to vector<1x128xf32>
    %117 = arith.subf %116, %115 : vector<1x128xf32>
    %118 = arith.mulf %114, %117 : vector<1x128xf32>
    %c1_i32_35 = arith.constant 1 : i32
    %119 = arith.subi %c4_i32, %c1_i32_35 : i32
    %120 = arith.index_cast %119 : i32 to index
    %121 = memref.load %arg1[%120] : memref<7xf32, #tpu.memory_space<smem>>
    %cst_36 = arith.constant 1.000000e+00 : f32
    %122 = arith.subf %cst_36, %121 : f32
    %123 = vector.broadcast %122 : f32 to vector<1x128xf32>
    %124 = arith.mulf %123, %118 : vector<1x128xf32>
    %125 = vector.broadcast %124 : vector<1x128xf32> to vector<128x128xf32>
    %126 = arith.mulf %100, %125 : vector<128x128xf32>
    %127 = vector.broadcast %121 : f32 to vector<128x128xf32>
    %128 = arith.mulf %127, %0 : vector<128x128xf32>
    %129 = arith.addf %126, %128 : vector<128x128xf32>
    %130 = arith.mulf %111, %129 : vector<128x128xf32>
    %c5_i32 = arith.constant 5 : i32
    %131 = arith.index_cast %c5_i32 : i32 to index
    %c0_37 = arith.constant 0 : index
    %132 = vector.load %arg2[%131, %c0_37] : memref<8x128xf32, #tpu.memory_space<vmem>>, vector<1x128xf32>
    %133 = arith.index_cast %c5_i32 : i32 to index
    %c0_38 = arith.constant 0 : index
    %c0_39 = arith.constant 0 : index
    %134 = vector.load %arg3[%133, %c0_38, %c0_39] : memref<8x128x1xf32, #tpu.memory_space<vmem>>, vector<1x128x1xf32>
    %135 = vector.shape_cast %134 : vector<1x128x1xf32> to vector<128x1xf32>
    %136 = vector.broadcast %135 : vector<128x1xf32> to vector<128x128xf32>
    %137 = vector.broadcast %132 : vector<1x128xf32> to vector<128x128xf32>
    %138 = arith.cmpf oeq, %136, %137 : vector<128x128xf32>
    %139 = vector.broadcast %cst_7 : f32 to vector<128x128xf32>
    %140 = vector.broadcast %cst_8 : f32 to vector<128x128xf32>
    %141 = arith.select %138, %139, %140 : vector<128x128xi1>, vector<128x128xf32>
    %cst_40 = arith.constant dense<0.000000e+00> : vector<128xf32>
    %142 = vector.multi_reduction <add>, %130, %cst_40 [0] : vector<128x128xf32> to vector<128xf32>
    %143 = vector.shape_cast %142 : vector<128xf32> to vector<1x128xf32>
    %144 = tpu.reciprocal %143 {approx = true} : vector<1x128xf32> -> vector<1x128xf32>
    %145 = arith.mulf %143, %144 : vector<1x128xf32>
    %cst_41 = arith.constant 2.000000e+00 : f32
    %146 = vector.broadcast %cst_41 : f32 to vector<1x128xf32>
    %147 = arith.subf %146, %145 : vector<1x128xf32>
    %148 = arith.mulf %144, %147 : vector<1x128xf32>
    %c1_i32_42 = arith.constant 1 : i32
    %149 = arith.subi %c5_i32, %c1_i32_42 : i32
    %150 = arith.index_cast %149 : i32 to index
    %151 = memref.load %arg1[%150] : memref<7xf32, #tpu.memory_space<smem>>
    %cst_43 = arith.constant 1.000000e+00 : f32
    %152 = arith.subf %cst_43, %151 : f32
    %153 = vector.broadcast %152 : f32 to vector<1x128xf32>
    %154 = arith.mulf %153, %148 : vector<1x128xf32>
    %155 = vector.broadcast %154 : vector<1x128xf32> to vector<128x128xf32>
    %156 = arith.mulf %130, %155 : vector<128x128xf32>
    %157 = vector.broadcast %151 : f32 to vector<128x128xf32>
    %158 = arith.mulf %157, %0 : vector<128x128xf32>
    %159 = arith.addf %156, %158 : vector<128x128xf32>
    %160 = arith.mulf %141, %159 : vector<128x128xf32>
    %c6_i32 = arith.constant 6 : i32
    %161 = arith.index_cast %c6_i32 : i32 to index
    %c0_44 = arith.constant 0 : index
    %162 = vector.load %arg2[%161, %c0_44] : memref<8x128xf32, #tpu.memory_space<vmem>>, vector<1x128xf32>
    %163 = arith.index_cast %c6_i32 : i32 to index
    %c0_45 = arith.constant 0 : index
    %c0_46 = arith.constant 0 : index
    %164 = vector.load %arg3[%163, %c0_45, %c0_46] : memref<8x128x1xf32, #tpu.memory_space<vmem>>, vector<1x128x1xf32>
    %165 = vector.shape_cast %164 : vector<1x128x1xf32> to vector<128x1xf32>
    %166 = vector.broadcast %165 : vector<128x1xf32> to vector<128x128xf32>
    %167 = vector.broadcast %162 : vector<1x128xf32> to vector<128x128xf32>
    %168 = arith.cmpf oeq, %166, %167 : vector<128x128xf32>
    %169 = vector.broadcast %cst_7 : f32 to vector<128x128xf32>
    %170 = vector.broadcast %cst_8 : f32 to vector<128x128xf32>
    %171 = arith.select %168, %169, %170 : vector<128x128xi1>, vector<128x128xf32>
    %cst_47 = arith.constant dense<0.000000e+00> : vector<128xf32>
    %172 = vector.multi_reduction <add>, %160, %cst_47 [0] : vector<128x128xf32> to vector<128xf32>
    %173 = vector.shape_cast %172 : vector<128xf32> to vector<1x128xf32>
    %174 = tpu.reciprocal %173 {approx = true} : vector<1x128xf32> -> vector<1x128xf32>
    %175 = arith.mulf %173, %174 : vector<1x128xf32>
    %cst_48 = arith.constant 2.000000e+00 : f32
    %176 = vector.broadcast %cst_48 : f32 to vector<1x128xf32>
    %177 = arith.subf %176, %175 : vector<1x128xf32>
    %178 = arith.mulf %174, %177 : vector<1x128xf32>
    %c1_i32_49 = arith.constant 1 : i32
    %179 = arith.subi %c6_i32, %c1_i32_49 : i32
    %180 = arith.index_cast %179 : i32 to index
    %181 = memref.load %arg1[%180] : memref<7xf32, #tpu.memory_space<smem>>
    %cst_50 = arith.constant 1.000000e+00 : f32
    %182 = arith.subf %cst_50, %181 : f32
    %183 = vector.broadcast %182 : f32 to vector<1x128xf32>
    %184 = arith.mulf %183, %178 : vector<1x128xf32>
    %185 = vector.broadcast %184 : vector<1x128xf32> to vector<128x128xf32>
    %186 = arith.mulf %160, %185 : vector<128x128xf32>
    %187 = vector.broadcast %181 : f32 to vector<128x128xf32>
    %188 = arith.mulf %187, %0 : vector<128x128xf32>
    %189 = arith.addf %186, %188 : vector<128x128xf32>
    %190 = arith.mulf %171, %189 : vector<128x128xf32>
    %c6_i32_51 = arith.constant 6 : i32
    %c0_52 = arith.constant 0 : index
    %c0_53 = arith.constant 0 : index
    %191 = vector.load %arg5[%c0_52, %c0_53] : memref<128x128xf32, #tpu.memory_space<vmem>>, vector<128x128xf32>
    tpu.vector_store %arg5[%c0_52, %c0_53], %190 {strides = array<i32>} : memref<128x128xf32, #tpu.memory_space<vmem>>, vector<128x128xf32>,
    return
  }
  func.func @transform_0(%arg0: i32) -> i32 {
    %c0_i32 = arith.constant 0 : i32
    %c0_i32_0 = arith.constant 0 : i32
    return %c0_i32 : i32
  }
  func.func @transform_1(%arg0: i32) -> (i32, i32) {
    %c0_i32 = arith.constant 0 : i32
    %c0_i32_0 = arith.constant 0 : i32
    return %c0_i32, %arg0 : i32, i32
  }
  func.func @transform_2(%arg0: i32) -> (i32, i32, i32) {
    %c0_i32 = arith.constant 0 : i32
    %c0_i32_0 = arith.constant 0 : i32
    %c0_i32_1 = arith.constant 0 : i32
    %c0_i32_2 = arith.constant 0 : i32
    return %c0_i32, %c0_i32_0, %c0_i32_1 : i32, i32, i32
  }
  func.func @transform_3(%arg0: i32) -> (i32, i32) {
    %c0_i32 = arith.constant 0 : i32
    %c0_i32_0 = arith.constant 0 : i32
    return %c0_i32, %arg0 : i32, i32
  }
  func.func @transform_4(%arg0: i32) -> (i32, i32) {
    %c0_i32 = arith.constant 0 : i32
    %c0_i32_0 = arith.constant 0 : i32
    return %c0_i32, %arg0 : i32, i32
  }
}

</mosaic_0001>

<llo_original>
// kernel: listephens_forward.1
$region0: #{listephens_forward.1}
  #allocation0 [shape = 'u32[]', space=smem, size = 0x4, offset = 0x4, fixed_abs, tag = 'smem constant byte address 0x4 - core index']
  #allocation1 [shape = 'u32[144,128]{1,0:T(1,128)}', space=vmem, size = 0x12000, scoped, tag = 'internal scratch']
  %s0 = inlined_call_operand.vmem [shape: f32[7], index: 0, kind: input, shape index: {}]
  %s1 = inlined_call_operand.vmem [shape: f32[8,128], index: 1, kind: input, shape index: {}]
  %s2 = inlined_call_operand.vmem [shape: f32[8,128,1], index: 2, kind: input, shape index: {}]
  %s3 = inlined_call_operand.vmem [shape: f32[128,128], index: 3, kind: input, shape index: {}]
  %s4 = inlined_call_operand.hbm [shape: f32[128,128], index: 4, kind: output, shape index: {}]
  %s5 = sld [smem:[#allocation0]]
  $region30: #{listephens_forward.1} parent=0
    _
  %s7 = ssub.s32 1, %s5
  %s8 = scalar_select 0, %s7, %s5
  $region1: #{listephens_forward.1} parent=0
    #allocation2 [shape = 'u8[512]{0}', space=smem, size = 0x200, scoped, tag = 'input window, operand 0, single buffered']
    #allocation3 [shape = 's32[1]{0}', space=sflag, size = 0x4, scoped, tag = 'scoped memory for listephens_forward.1']
    #allocation4 [shape = 's32[1]{0}', space=sflag, size = 0x4, scoped, tag = 'scoped memory for listephens_forward.1']
    #allocation5 [shape = 'u8[65536]{0}', space=vmem, size = 0x10000, scoped, tag = 'output window, operand 0, single buffered']
    %9 = vsyncpa [#allocation4], 0
    %10 = vsyncpa [#allocation3], 0
    // Predicated region
    $region2: #{listephens_forward.1} parent=1 // pred_check
      _
    $region3: #{listephens_forward.1} parent=1 // pred_check_branch
      %12 = sbr.rel (0) target = $region5
    $region4: #{listephens_forward.1} parent=1 // pred_region
      %s14 = ssub.s32 16, 16
      %15 = vsyncadd [#allocation4], %s14
      %s17 = sshll.u32 %s0, 4
      %s18 = int_to_ptr.vmem [resolvable:$true] %s17
      %20 = dma.vmem_to_smem %s18, 16, [#allocation2], [#allocation4]
    $region5: #{listephens_forward.1} parent=1 // pred_fallthru
      _
    // Predicated region
    $region6: #{listephens_forward.1} parent=1 // pred_check
      _
    $region7: #{listephens_forward.1} parent=1 // pred_check_branch
      %22 = sbr.rel (0) target = $region9
    $region8: #{listephens_forward.1} parent=1 // pred_region
      _
    $region9: #{listephens_forward.1} parent=1 // pred_fallthru
      _
    // Predicated region
    $region10: #{listephens_forward.1} parent=1 // pred_check
      _
    $region11: #{listephens_forward.1} parent=1 // pred_check_branch
      %24 = sbr.rel (0) target = $region13
    $region12: #{listephens_forward.1} parent=1 // pred_region
      _
    $region13: #{listephens_forward.1} parent=1 // pred_fallthru
      _
    // Predicated region
    $region14: #{listephens_forward.1} parent=1 // pred_check
      _
    $region15: #{listephens_forward.1} parent=1 // pred_check_branch
      %26 = sbr.rel (0) target = $region17
    $region16: #{listephens_forward.1} parent=1 // pred_region
      _
    $region17: #{listephens_forward.1} parent=1 // pred_fallthru
      _
    // Predicated region
    $region18: #{listephens_forward.1} parent=1 // pred_check
      _
    $region19: #{listephens_forward.1} parent=1 // pred_check_branch
      %28 = sbr.rel (0) target = $region21
    $region20: #{listephens_forward.1} parent=1 // pred_region
      %29 = dma.done [#allocation4], 16
    $region21: #{listephens_forward.1} parent=1 // pred_fallthru
      _
    %30 = sfence
    %v31 = vld [vmem:[%s3] sm:$0xff]
    %v32 = vld [vmem:[%s3 + $0x8] sm:$0xff]
    %v33 = vld [vmem:[%s3 + $0x10] sm:$0xff]
    %v34 = vld [vmem:[%s3 + $0x18] sm:$0xff]
    %v35 = vld [vmem:[%s3 + $0x20] sm:$0xff]
    %v36 = vld [vmem:[%s3 + $0x28] sm:$0xff]
    %v37 = vld [vmem:[%s3 + $0x30] sm:$0xff]
    %v38 = vld [vmem:[%s3 + $0x38] sm:$0xff]
    %v39 = vld [vmem:[%s3 + $0x40] sm:$0xff]
    %v40 = vld [vmem:[%s3 + $0x48] sm:$0xff]
    %v41 = vld [vmem:[%s3 + $0x50] sm:$0xff]
    %v42 = vld [vmem:[%s3 + $0x58] sm:$0xff]
    %v43 = vld [vmem:[%s3 + $0x60] sm:$0xff]
    %v44 = vld [vmem:[%s3 + $0x68] sm:$0xff]
    %v45 = vld [vmem:[%s3 + $0x70] sm:$0xff]
    %v46 = vld [vmem:[%s3 + $0x78] sm:$0xff]
    %v47 = vld [vmem:[%s1] sm:$0x1]
    %v48 = vld [vmem:[%s2] sm:$0xff]
    %v49 = vld [vmem:[%s2 + $0x8] sm:$0xff]
    %v50 = vld [vmem:[%s2 + $0x10] sm:$0xff]
    %v51 = vld [vmem:[%s2 + $0x18] sm:$0xff]
    %v52 = vld [vmem:[%s2 + $0x20] sm:$0xff]
    %v53 = vld [vmem:[%s2 + $0x28] sm:$0xff]
    %v54 = vld [vmem:[%s2 + $0x30] sm:$0xff]
    %v55 = vld [vmem:[%s2 + $0x38] sm:$0xff]
    %v56 = vld [vmem:[%s2 + $0x40] sm:$0xff]
    %v57 = vld [vmem:[%s2 + $0x48] sm:$0xff]
    %v58 = vld [vmem:[%s2 + $0x50] sm:$0xff]
    %v59 = vld [vmem:[%s2 + $0x58] sm:$0xff]
    %v60 = vld [vmem:[%s2 + $0x60] sm:$0xff]
    %v61 = vld [vmem:[%s2 + $0x68] sm:$0xff]
    %v62 = vld [vmem:[%s2 + $0x70] sm:$0xff]
    %v63 = vld [vmem:[%s2 + $0x78] sm:$0xff]
    %65 = vset.pattern.permute.xlu0 0
    %66 = vperm.xlu0 %65, %v48
    %v67 = vpop.permute.xlu0 %66
    %70 = vset.pattern.permute.xlu0 0
    %71 = vperm.xlu0 %70, %v49
    %v72 = vpop.permute.xlu0 %71
    %75 = vset.pattern.permute.xlu0 0
    %76 = vperm.xlu0 %75, %v50
    %v77 = vpop.permute.xlu0 %76
    %80 = vset.pattern.permute.xlu0 0
    %81 = vperm.xlu0 %80, %v51
    %v82 = vpop.permute.xlu0 %81
    %85 = vset.pattern.permute.xlu0 0
    %86 = vperm.xlu0 %85, %v52
    %v87 = vpop.permute.xlu0 %86
    %90 = vset.pattern.permute.xlu0 0
    %91 = vperm.xlu0 %90, %v53
    %v92 = vpop.permute.xlu0 %91
    %95 = vset.pattern.permute.xlu0 0
    %96 = vperm.xlu0 %95, %v54
    %v97 = vpop.permute.xlu0 %96
    %100 = vset.pattern.permute.xlu0 0
    %101 = vperm.xlu0 %100, %v55
    %v102 = vpop.permute.xlu0 %101
    %105 = vset.pattern.permute.xlu0 0
    %106 = vperm.xlu0 %105, %v56
    %v107 = vpop.permute.xlu0 %106
    %110 = vset.pattern.permute.xlu0 0
    %111 = vperm.xlu0 %110, %v57
    %v112 = vpop.permute.xlu0 %111
    %115 = vset.pattern.permute.xlu0 0
    %116 = vperm.xlu0 %115, %v58
    %v117 = vpop.permute.xlu0 %116
    %120 = vset.pattern.permute.xlu0 0
    %121 = vperm.xlu0 %120, %v59
    %v122 = vpop.permute.xlu0 %121
    %125 = vset.pattern.permute.xlu0 0
    %126 = vperm.xlu0 %125, %v60
    %v127 = vpop.permute.xlu0 %126
    %130 = vset.pattern.permute.xlu0 0
    %131 = vperm.xlu0 %130, %v61
    %v132 = vpop.permute.xlu0 %131
    %135 = vset.pattern.permute.xlu0 0
    %136 = vperm.xlu0 %135, %v62
    %v137 = vpop.permute.xlu0 %136
    %140 = vset.pattern.permute.xlu0 0
    %141 = vperm.xlu0 %140, %v63
    %v142 = vpop.permute.xlu0 %141
    %v144 = vlaneseq
    %v145 = vshrl.u32 %v144, 7
    %v146 = vsub.s32 0, %v145
    %v147 = vrot.slane %v47, %v146
    %vm148 = vcmp.eq.f32.partialorder %v67, %v147
    %vm149 = vcmp.eq.f32.partialorder %v72, %v147
    %vm150 = vcmp.eq.f32.partialorder %v77, %v147
    %vm151 = vcmp.eq.f32.partialorder %v82, %v147
    %vm152 = vcmp.eq.f32.partialorder %v87, %v147
    %vm153 = vcmp.eq.f32.partialorder %v92, %v147
    %vm154 = vcmp.eq.f32.partialorder %v97, %v147
    %vm155 = vcmp.eq.f32.partialorder %v102, %v147
    %vm156 = vcmp.eq.f32.partialorder %v107, %v147
    %vm157 = vcmp.eq.f32.partialorder %v112, %v147
    %vm158 = vcmp.eq.f32.partialorder %v117, %v147
    %vm159 = vcmp.eq.f32.partialorder %v122, %v147
    %vm160 = vcmp.eq.f32.partialorder %v127, %v147
    %vm161 = vcmp.eq.f32.partialorder %v132, %v147
    %vm162 = vcmp.eq.f32.partialorder %v137, %v147
    %vm163 = vcmp.eq.f32.partialorder %v142, %v147
    %v164 = vsel %vm148, 0.999, 0.001
    %v165 = vsel %vm149, 0.999, 0.001
    %v166 = vsel %vm150, 0.999, 0.001
    %v167 = vsel %vm151, 0.999, 0.001
    %v168 = vsel %vm152, 0.999, 0.001
    %v169 = vsel %vm153, 0.999, 0.001
    %v170 = vsel %vm154, 0.999, 0.001
    %v171 = vsel %vm155, 0.999, 0.001
    %v172 = vsel %vm156, 0.999, 0.001
    %v173 = vsel %vm157, 0.999, 0.001
    %v174 = vsel %vm158, 0.999, 0.001
    %v175 = vsel %vm159, 0.999, 0.001
    %v176 = vsel %vm160, 0.999, 0.001
    %v177 = vsel %vm161, 0.999, 0.001
    %v178 = vsel %vm162, 0.999, 0.001
    %v179 = vsel %vm163, 0.999, 0.001
    %v180 = vmul.f32 %v164, %v31
    %v181 = vmul.f32 %v165, %v32
    %v182 = vmul.f32 %v166, %v33
    %v183 = vmul.f32 %v167, %v34
    %v184 = vmul.f32 %v168, %v35
    %v185 = vmul.f32 %v169, %v36
    %v186 = vmul.f32 %v170, %v37
    %v187 = vmul.f32 %v171, %v38
    %v188 = vmul.f32 %v172, %v39
    %v189 = vmul.f32 %v173, %v40
    %v190 = vmul.f32 %v174, %v41
    %v191 = vmul.f32 %v175, %v42
    %v192 = vmul.f32 %v176, %v43
    %v193 = vmul.f32 %v177, %v44
    %v194 = vmul.f32 %v178, %v45
    %v195 = vmul.f32 %v179, %v46
    %v196 = vld [vmem:[%s1 + $0x1] sm:$0x1]
    %s197 = scalar_lea.vmem %s2, 128
    %v198 = vld [vmem:[%s197] sm:$0xff]
    %v199 = vld [vmem:[%s197 + $0x8] sm:$0xff]
    %v200 = vld [vmem:[%s197 + $0x10] sm:$0xff]
    %v201 = vld [vmem:[%s197 + $0x18] sm:$0xff]
    %v202 = vld [vmem:[%s197 + $0x20] sm:$0xff]
    %v203 = vld [vmem:[%s197 + $0x28] sm:$0xff]
    %v204 = vld [vmem:[%s197 + $0x30] sm:$0xff]
    %v205 = vld [vmem:[%s197 + $0x38] sm:$0xff]
    %v206 = vld [vmem:[%s197 + $0x40] sm:$0xff]
    %v207 = vld [vmem:[%s197 + $0x48] sm:$0xff]
    %v208 = vld [vmem:[%s197 + $0x50] sm:$0xff]
    %v209 = vld [vmem:[%s197 + $0x58] sm:$0xff]
    %v210 = vld [vmem:[%s197 + $0x60] sm:$0xff]
    %v211 = vld [vmem:[%s197 + $0x68] sm:$0xff]
    %v212 = vld [vmem:[%s197 + $0x70] sm:$0xff]
    %v213 = vld [vmem:[%s197 + $0x78] sm:$0xff]
    %215 = vset.pattern.permute.xlu0 0
    %216 = vperm.xlu0 %215, %v198
    %v217 = vpop.permute.xlu0 %216
    %220 = vset.pattern.permute.xlu0 0
    %221 = vperm.xlu0 %220, %v199
    %v222 = vpop.permute.xlu0 %221
    %225 = vset.pattern.permute.xlu0 0
    %226 = vperm.xlu0 %225, %v200
    %v227 = vpop.permute.xlu0 %226
    %230 = vset.pattern.permute.xlu0 0
    %231 = vperm.xlu0 %230, %v201
    %v232 = vpop.permute.xlu0 %231
    %235 = vset.pattern.permute.xlu0 0
    %236 = vperm.xlu0 %235, %v202
    %v237 = vpop.permute.xlu0 %236
    %240 = vset.pattern.permute.xlu0 0
    %241 = vperm.xlu0 %240, %v203
    %v242 = vpop.permute.xlu0 %241
    %245 = vset.pattern.permute.xlu0 0
    %246 = vperm.xlu0 %245, %v204
    %v247 = vpop.permute.xlu0 %246
    %250 = vset.pattern.permute.xlu0 0
    %251 = vperm.xlu0 %250, %v205
    %v252 = vpop.permute.xlu0 %251
    %255 = vset.pattern.permute.xlu0 0
    %256 = vperm.xlu0 %255, %v206
    %v257 = vpop.permute.xlu0 %256
    %260 = vset.pattern.permute.xlu0 0
    %261 = vperm.xlu0 %260, %v207
    %v262 = vpop.permute.xlu0 %261
    %265 = vset.pattern.permute.xlu0 0
    %266 = vperm.xlu0 %265, %v208
    %v267 = vpop.permute.xlu0 %266
    %270 = vset.pattern.permute.xlu0 0
    %271 = vperm.xlu0 %270, %v209
    %v272 = vpop.permute.xlu0 %271
    %275 = vset.pattern.permute.xlu0 0
    %276 = vperm.xlu0 %275, %v210
    %v277 = vpop.permute.xlu0 %276
    %280 = vset.pattern.permute.xlu0 0
    %281 = vperm.xlu0 %280, %v211
    %v282 = vpop.permute.xlu0 %281
    %285 = vset.pattern.permute.xlu0 0
    %286 = vperm.xlu0 %285, %v212
    %v287 = vpop.permute.xlu0 %286
    %290 = vset.pattern.permute.xlu0 0
    %291 = vperm.xlu0 %290, %v213
    %v292 = vpop.permute.xlu0 %291
    %v294 = vlaneseq
    %v295 = vshrl.u32 %v294, 7
    %v296 = vsub.s32 0, %v295
    %v297 = vrot.slane %v196, %v296
    %vm298 = vcmp.eq.f32.partialorder %v217, %v297
    %vm299 = vcmp.eq.f32.partialorder %v222, %v297
    %vm300 = vcmp.eq.f32.partialorder %v227, %v297
    %vm301 = vcmp.eq.f32.partialorder %v232, %v297
    %vm302 = vcmp.eq.f32.partialorder %v237, %v297
    %vm303 = vcmp.eq.f32.partialorder %v242, %v297
    %vm304 = vcmp.eq.f32.partialorder %v247, %v297
    %vm305 = vcmp.eq.f32.partialorder %v252, %v297
    %vm306 = vcmp.eq.f32.partialorder %v257, %v297
    %vm307 = vcmp.eq.f32.partialorder %v262, %v297
    %vm308 = vcmp.eq.f32.partialorder %v267, %v297
    %vm309 = vcmp.eq.f32.partialorder %v272, %v297
    %vm310 = vcmp.eq.f32.partialorder %v277, %v297
    %vm311 = vcmp.eq.f32.partialorder %v282, %v297
    %vm312 = vcmp.eq.f32.partialorder %v287, %v297
    %vm313 = vcmp.eq.f32.partialorder %v292, %v297
    %v314 = vsel %vm298, 0.999, 0.001
    %v315 = vsel %vm299, 0.999, 0.001
    %v316 = vsel %vm300, 0.999, 0.001
    %v317 = vsel %vm301, 0.999, 0.001
    %v318 = vsel %vm302, 0.999, 0.001
    %v319 = vsel %vm303, 0.999, 0.001
    %v320 = vsel %vm304, 0.999, 0.001
    %v321 = vsel %vm305, 0.999, 0.001
    %v322 = vsel %vm306, 0.999, 0.001
    %v323 = vsel %vm307, 0.999, 0.001
    %v324 = vsel %vm308, 0.999, 0.001
    %v325 = vsel %vm309, 0.999, 0.001
    %v326 = vsel %vm310, 0.999, 0.001
    %v327 = vsel %vm311, 0.999, 0.001
    %v328 = vsel %vm312, 0.999, 0.001
    %v329 = vsel %vm313, 0.999, 0.001
    %v330 = vadd.f32 %v180, %v181
    %v331 = vadd.f32 %v330, %v182
    %v332 = vadd.f32 %v331, %v183
    %v333 = vadd.f32 %v332, %v184
    %v334 = vadd.f32 %v333, %v185
    %v335 = vadd.f32 %v334, %v186
    %v336 = vadd.f32 %v335, %v187
    %v337 = vadd.f32 %v336, %v188
    %v338 = vadd.f32 %v337, %v189
    %v339 = vadd.f32 %v338, %v190
    %v340 = vadd.f32 %v339, %v191
    %v341 = vadd.f32 %v340, %v192
    %v342 = vadd.f32 %v341, %v193
    %v343 = vadd.f32 %v342, %v194
    %v344 = vadd.f32 %v343, %v195
    %v345 = vrot.slane %v344, 4
    %v346 = vadd.f32 %v344, %v345
    %v347 = vrot.slane %v346, 2
    %v348 = vadd.f32 %v346, %v347
    %v349 = vrot.slane %v348, 1
    %v350 = vadd.f32 %v348, %v349
    %v351 = vrcp.pop %v350
    %v352 = vmul.f32 %v350, %v351
    %v353 = vsub.f32 2.0, %v352
    %v354 = vmul.f32 %v351, %v353
    %s355 = sld [smem:[#allocation2]]
    %s356 = ssub.f32 1.0, %s355
    %v357 = vstv %s356
    %v358 = vmul.f32 %v357, %v354
    %v359 = vmul.f32 %v180, %v358
    %v360 = vmul.f32 %v181, %v358
    %v361 = vmul.f32 %v182, %v358
    %v362 = vmul.f32 %v183, %v358
    %v363 = vmul.f32 %v184, %v358
    %v364 = vmul.f32 %v185, %v358
    %v365 = vmul.f32 %v186, %v358
    %v366 = vmul.f32 %v187, %v358
    %v367 = vmul.f32 %v188, %v358
    %v368 = vmul.f32 %v189, %v358
    %v369 = vmul.f32 %v190, %v358
    %v370 = vmul.f32 %v191, %v358
    %v371 = vmul.f32 %v192, %v358
    %v372 = vmul.f32 %v193, %v358
    %v373 = vmul.f32 %v194, %v358
    %v374 = vmul.f32 %v195, %v358
    %v375 = vstv %s355
    %v376 = vmul.f32 %v375, %v31
    %v377 = vmul.f32 %v375, %v32
    %v378 = vmul.f32 %v375, %v33
    %v379 = vmul.f32 %v375, %v34
    %v380 = vmul.f32 %v375, %v35
    %v381 = vmul.f32 %v375, %v36
    %v382 = vmul.f32 %v375, %v37
    %v383 = vmul.f32 %v375, %v38
    %v384 = vmul.f32 %v375, %v39
    %v385 = vmul.f32 %v375, %v40
    %v386 = vmul.f32 %v375, %v41
    %v387 = vmul.f32 %v375, %v42
    %v388 = vmul.f32 %v375, %v43
    %v389 = vmul.f32 %v375, %v44
    %v390 = vmul.f32 %v375, %v45
    %v391 = vmul.f32 %v375, %v46
    %v392 = vadd.f32 %v359, %v376
    %v393 = vadd.f32 %v360, %v377
    %v394 = vadd.f32 %v361, %v378
    %v395 = vadd.f32 %v362, %v379
    %v396 = vadd.f32 %v363, %v380
    %v397 = vadd.f32 %v364, %v381
    %v398 = vadd.f32 %v365, %v382
    %v399 = vadd.f32 %v366, %v383
    %v400 = vadd.f32 %v367, %v384
    %v401 = vadd.f32 %v368, %v385
    %v402 = vadd.f32 %v369, %v386
    %v403 = vadd.f32 %v370, %v387
    %v404 = vadd.f32 %v371, %v388
    %v405 = vadd.f32 %v372, %v389
    %v406 = vadd.f32 %v373, %v390
    %v407 = vadd.f32 %v374, %v391
    %v408 = vmul.f32 %v314, %v392
    %v409 = vmul.f32 %v315, %v393
    %v410 = vmul.f32 %v316, %v394
    %v411 = vmul.f32 %v317, %v395
    %v412 = vmul.f32 %v318, %v396
    %v413 = vmul.f32 %v319, %v397
    %v414 = vmul.f32 %v320, %v398
    %v415 = vmul.f32 %v321, %v399
    %v416 = vmul.f32 %v322, %v400
    %v417 = vmul.f32 %v323, %v401
    %v418 = vmul.f32 %v324, %v402
    %v419 = vmul.f32 %v325, %v403
    %v420 = vmul.f32 %v326, %v404
    %v421 = vmul.f32 %v327, %v405
    %v422 = vmul.f32 %v328, %v406
    %v423 = vmul.f32 %v329, %v407
    %v424 = vld [vmem:[%s1 + $0x2] sm:$0x1]
    %s425 = scalar_lea.vmem %s2, 256
    %v426 = vld [vmem:[%s425] sm:$0xff]
    %v427 = vld [vmem:[%s425 + $0x8] sm:$0xff]
    %v428 = vld [vmem:[%s425 + $0x10] sm:$0xff]
    %v429 = vld [vmem:[%s425 + $0x18] sm:$0xff]
    %v430 = vld [vmem:[%s425 + $0x20] sm:$0xff]
    %v431 = vld [vmem:[%s425 + $0x28] sm:$0xff]
    %v432 = vld [vmem:[%s425 + $0x30] sm:$0xff]
    %v433 = vld [vmem:[%s425 + $0x38] sm:$0xff]
    %v434 = vld [vmem:[%s425 + $0x40] sm:$0xff]
    %v435 = vld [vmem:[%s425 + $0x48] sm:$0xff]
    %v436 = vld [vmem:[%s425 + $0x50] sm:$0xff]
    %v437 = vld [vmem:[%s425 + $0x58] sm:$0xff]
    %v438 = vld [vmem:[%s425 + $0x60] sm:$0xff]
    %v439 = vld [vmem:[%s425 + $0x68] sm:$0xff]
    %v440 = vld [vmem:[%s425 + $0x70] sm:$0xff]
    %v441 = vld [vmem:[%s425 + $0x78] sm:$0xff]
    %443 = vset.pattern.permute.xlu0 0
    %444 = vperm.xlu0 %443, %v426
    %v445 = vpop.permute.xlu0 %444
    %448 = vset.pattern.permute.xlu0 0
    %449 = vperm.xlu0 %448, %v427
    %v450 = vpop.permute.xlu0 %449
    %453 = vset.pattern.permute.xlu0 0
    %454 = vperm.xlu0 %453, %v428
    %v455 = vpop.permute.xlu0 %454
    %458 = vset.pattern.permute.xlu0 0
    %459 = vperm.xlu0 %458, %v429
    %v460 = vpop.permute.xlu0 %459
    %463 = vset.pattern.permute.xlu0 0
    %464 = vperm.xlu0 %463, %v430
    %v465 = vpop.permute.xlu0 %464
    %468 = vset.pattern.permute.xlu0 0
    %469 = vperm.xlu0 %468, %v431
    %v470 = vpop.permute.xlu0 %469
    %473 = vset.pattern.permute.xlu0 0
    %474 = vperm.xlu0 %473, %v432
    %v475 = vpop.permute.xlu0 %474
    %478 = vset.pattern.permute.xlu0 0
    %479 = vperm.xlu0 %478, %v433
    %v480 = vpop.permute.xlu0 %479
    %483 = vset.pattern.permute.xlu0 0
    %484 = vperm.xlu0 %483, %v434
    %v485 = vpop.permute.xlu0 %484
    %488 = vset.pattern.permute.xlu0 0
    %489 = vperm.xlu0 %488, %v435
    %v490 = vpop.permute.xlu0 %489
    %493 = vset.pattern.permute.xlu0 0
    %494 = vperm.xlu0 %493, %v436
    %v495 = vpop.permute.xlu0 %494
    %498 = vset.pattern.permute.xlu0 0
    %499 = vperm.xlu0 %498, %v437
    %v500 = vpop.permute.xlu0 %499
    %503 = vset.pattern.permute.xlu0 0
    %504 = vperm.xlu0 %503, %v438
    %v505 = vpop.permute.xlu0 %504
    %508 = vset.pattern.permute.xlu0 0
    %509 = vperm.xlu0 %508, %v439
    %v510 = vpop.permute.xlu0 %509
    %513 = vset.pattern.permute.xlu0 0
    %514 = vperm.xlu0 %513, %v440
    %v515 = vpop.permute.xlu0 %514
    %518 = vset.pattern.permute.xlu0 0
    %519 = vperm.xlu0 %518, %v441
    %v520 = vpop.permute.xlu0 %519
    %v522 = vlaneseq
    %v523 = vshrl.u32 %v522, 7
    %v524 = vsub.s32 0, %v523
    %v525 = vrot.slane %v424, %v524
    %vm526 = vcmp.eq.f32.partialorder %v445, %v525
    %vm527 = vcmp.eq.f32.partialorder %v450, %v525
    %vm528 = vcmp.eq.f32.partialorder %v455, %v525
    %vm529 = vcmp.eq.f32.partialorder %v460, %v525
    %vm530 = vcmp.eq.f32.partialorder %v465, %v525
    %vm531 = vcmp.eq.f32.partialorder %v470, %v525
    %vm532 = vcmp.eq.f32.partialorder %v475, %v525
    %vm533 = vcmp.eq.f32.partialorder %v480, %v525
    %vm534 = vcmp.eq.f32.partialorder %v485, %v525
    %vm535 = vcmp.eq.f32.partialorder %v490, %v525
    %vm536 = vcmp.eq.f32.partialorder %v495, %v525
    %vm537 = vcmp.eq.f32.partialorder %v500, %v525
    %vm538 = vcmp.eq.f32.partialorder %v505, %v525
    %vm539 = vcmp.eq.f32.partialorder %v510, %v525
    %vm540 = vcmp.eq.f32.partialorder %v515, %v525
    %vm541 = vcmp.eq.f32.partialorder %v520, %v525
    %v542 = vsel %vm526, 0.999, 0.001
    %v543 = vsel %vm527, 0.999, 0.001
    %v544 = vsel %vm528, 0.999, 0.001
    %v545 = vsel %vm529, 0.999, 0.001
    %v546 = vsel %vm530, 0.999, 0.001
    %v547 = vsel %vm531, 0.999, 0.001
    %v548 = vsel %vm532, 0.999, 0.001
    %v549 = vsel %vm533, 0.999, 0.001
    %v550 = vsel %vm534, 0.999, 0.001
    %v551 = vsel %vm535, 0.999, 0.001
    %v552 = vsel %vm536, 0.999, 0.001
    %v553 = vsel %vm537, 0.999, 0.001
    %v554 = vsel %vm538, 0.999, 0.001
    %v555 = vsel %vm539, 0.999, 0.001
    %v556 = vsel %vm540, 0.999, 0.001
    %v557 = vsel %vm541, 0.999, 0.001
    %v558 = vadd.f32 %v408, %v409
    %v559 = vadd.f32 %v558, %v410
    %v560 = vadd.f32 %v559, %v411
    %v561 = vadd.f32 %v560, %v412
    %v562 = vadd.f32 %v561, %v413
    %v563 = vadd.f32 %v562, %v414
    %v564 = vadd.f32 %v563, %v415
    %v565 = vadd.f32 %v564, %v416
    %v566 = vadd.f32 %v565, %v417
    %v567 = vadd.f32 %v566, %v418
    %v568 = vadd.f32 %v567, %v419
    %v569 = vadd.f32 %v568, %v420
    %v570 = vadd.f32 %v569, %v421
    %v571 = vadd.f32 %v570, %v422
    %v572 = vadd.f32 %v571, %v423
    %v573 = vrot.slane %v572, 4
    %v574 = vadd.f32 %v572, %v573
    %v575 = vrot.slane %v574, 2
    %v576 = vadd.f32 %v574, %v575
    %v577 = vrot.slane %v576, 1
    %v578 = vadd.f32 %v576, %v577
    %v579 = vrcp.pop %v578
    %v580 = vmul.f32 %v578, %v579
    %v581 = vsub.f32 2.0, %v580
    %v582 = vmul.f32 %v579, %v581
    %s583 = sld [smem:[#allocation2 + $0x1]]
    %s584 = ssub.f32 1.0, %s583
    %v585 = vstv %s584
    %v586 = vmul.f32 %v585, %v582
    %v587 = vmul.f32 %v408, %v586
    %v588 = vmul.f32 %v409, %v586
    %v589 = vmul.f32 %v410, %v586
    %v590 = vmul.f32 %v411, %v586
    %v591 = vmul.f32 %v412, %v586
    %v592 = vmul.f32 %v413, %v586
    %v593 = vmul.f32 %v414, %v586
    %v594 = vmul.f32 %v415, %v586
    %v595 = vmul.f32 %v416, %v586
    %v596 = vmul.f32 %v417, %v586
    %v597 = vmul.f32 %v418, %v586
    %v598 = vmul.f32 %v419, %v586
    %v599 = vmul.f32 %v420, %v586
    %v600 = vmul.f32 %v421, %v586
    %v601 = vmul.f32 %v422, %v586
    %v602 = vmul.f32 %v423, %v586
    %v603 = vstv %s583
    %v604 = vmul.f32 %v603, %v31
    %v605 = vmul.f32 %v603, %v32
    %v606 = vmul.f32 %v603, %v33
    %v607 = vmul.f32 %v603, %v34
    %v608 = vmul.f32 %v603, %v35
    %v609 = vmul.f32 %v603, %v36
    %v610 = vmul.f32 %v603, %v37
    %v611 = vmul.f32 %v603, %v38
    %v612 = vmul.f32 %v603, %v39
    %v613 = vmul.f32 %v603, %v40
    %v614 = vmul.f32 %v603, %v41
    %v615 = vmul.f32 %v603, %v42
    %v616 = vmul.f32 %v603, %v43
    %v617 = vmul.f32 %v603, %v44
    %v618 = vmul.f32 %v603, %v45
    %v619 = vmul.f32 %v603, %v46
    %v620 = vadd.f32 %v587, %v604
    %v621 = vadd.f32 %v588, %v605
    %v622 = vadd.f32 %v589, %v606
    %v623 = vadd.f32 %v590, %v607
    %v624 = vadd.f32 %v591, %v608
    %v625 = vadd.f32 %v592, %v609
    %v626 = vadd.f32 %v593, %v610
    %v627 = vadd.f32 %v594, %v611
    %v628 = vadd.f32 %v595, %v612
    %v629 = vadd.f32 %v596, %v613
    %v630 = vadd.f32 %v597, %v614
    %v631 = vadd.f32 %v598, %v615
    %v632 = vadd.f32 %v599, %v616
    %v633 = vadd.f32 %v600, %v617
    %v634 = vadd.f32 %v601, %v618
    %v635 = vadd.f32 %v602, %v619
    %v636 = vmul.f32 %v542, %v620
    %v637 = vmul.f32 %v543, %v621
    %v638 = vmul.f32 %v544, %v622
    %v639 = vmul.f32 %v545, %v623
    %v640 = vmul.f32 %v546, %v624
    %v641 = vmul.f32 %v547, %v625
    %v642 = vmul.f32 %v548, %v626
    %v643 = vmul.f32 %v549, %v627
    %v644 = vmul.f32 %v550, %v628
    %v645 = vmul.f32 %v551, %v629
    %v646 = vmul.f32 %v552, %v630
    %v647 = vmul.f32 %v553, %v631
    %v648 = vmul.f32 %v554, %v632
    %v649 = vmul.f32 %v555, %v633
    %v650 = vmul.f32 %v556, %v634
    %v651 = vmul.f32 %v557, %v635
    %v652 = vld [vmem:[%s1 + $0x3] sm:$0x1]
    %s653 = scalar_lea.vmem %s2, 384
    %v654 = vld [vmem:[%s653] sm:$0xff]
    %v655 = vld [vmem:[%s653 + $0x8] sm:$0xff]
    %v656 = vld [vmem:[%s653 + $0x10] sm:$0xff]
    %v657 = vld [vmem:[%s653 + $0x18] sm:$0xff]
    %v658 = vld [vmem:[%s653 + $0x20] sm:$0xff]
    %v659 = vld [vmem:[%s653 + $0x28] sm:$0xff]
    %v660 = vld [vmem:[%s653 + $0x30] sm:$0xff]
    %v661 = vld [vmem:[%s653 + $0x38] sm:$0xff]
    %v662 = vld [vmem:[%s653 + $0x40] sm:$0xff]
    %v663 = vld [vmem:[%s653 + $0x48] sm:$0xff]
    %v664 = vld [vmem:[%s653 + $0x50] sm:$0xff]
    %v665 = vld [vmem:[%s653 + $0x58] sm:$0xff]
    %v666 = vld [vmem:[%s653 + $0x60] sm:$0xff]
    %v667 = vld [vmem:[%s653 + $0x68] sm:$0xff]
    %v668 = vld [vmem:[%s653 + $0x70] sm:$0xff]
    %v669 = vld [vmem:[%s653 + $0x78] sm:$0xff]
    %671 = vset.pattern.permute.xlu0 0
    %672 = vperm.xlu0 %671, %v654
    %v673 = vpop.permute.xlu0 %672
    %676 = vset.pattern.permute.xlu0 0
    %677 = vperm.xlu0 %676, %v655
    %v678 = vpop.permute.xlu0 %677
    %681 = vset.pattern.permute.xlu0 0
    %682 = vperm.xlu0 %681, %v656
    %v683 = vpop.permute.xlu0 %682
    %686 = vset.pattern.permute.xlu0 0
    %687 = vperm.xlu0 %686, %v657
    %v688 = vpop.permute.xlu0 %687
    %691 = vset.pattern.permute.xlu0 0
    %692 = vperm.xlu0 %691, %v658
    %v693 = vpop.permute.xlu0 %692
    %696 = vset.pattern.permute.xlu0 0
    %697 = vperm.xlu0 %696, %v659
    %v698 = vpop.permute.xlu0 %697
    %701 = vset.pattern.permute.xlu0 0
    %702 = vperm.xlu0 %701, %v660
    %v703 = vpop.permute.xlu0 %702
    %706 = vset.pattern.permute.xlu0 0
    %707 = vperm.xlu0 %706, %v661
    %v708 = vpop.permute.xlu0 %707
    %711 = vset.pattern.permute.xlu0 0
    %712 = vperm.xlu0 %711, %v662
    %v713 = vpop.permute.xlu0 %712
    %716 = vset.pattern.permute.xlu0 0
    %717 = vperm.xlu0 %716, %v663
    %v718 = vpop.permute.xlu0 %717
    %721 = vset.pattern.permute.xlu0 0
    %722 = vperm.xlu0 %721, %v664
    %v723 = vpop.permute.xlu0 %722
    %726 = vset.pattern.permute.xlu0 0
    %727 = vperm.xlu0 %726, %v665
    %v728 = vpop.permute.xlu0 %727
    %731 = vset.pattern.permute.xlu0 0
    %732 = vperm.xlu0 %731, %v666
    %v733 = vpop.permute.xlu0 %732
    %736 = vset.pattern.permute.xlu0 0
    %737 = vperm.xlu0 %736, %v667
    %v738 = vpop.permute.xlu0 %737
    %741 = vset.pattern.permute.xlu0 0
    %742 = vperm.xlu0 %741, %v668
    %v743 = vpop.permute.xlu0 %742
    %746 = vset.pattern.permute.xlu0 0
    %747 = vperm.xlu0 %746, %v669
    %v748 = vpop.permute.xlu0 %747
    %v750 = vlaneseq
    %v751 = vshrl.u32 %v750, 7
    %v752 = vsub.s32 0, %v751
    %v753 = vrot.slane %v652, %v752
    %vm754 = vcmp.eq.f32.partialorder %v673, %v753
    %vm755 = vcmp.eq.f32.partialorder %v678, %v753
    %vm756 = vcmp.eq.f32.partialorder %v683, %v753
    %vm757 = vcmp.eq.f32.partialorder %v688, %v753
    %vm758 = vcmp.eq.f32.partialorder %v693, %v753
    %vm759 = vcmp.eq.f32.partialorder %v698, %v753
    %vm760 = vcmp.eq.f32.partialorder %v703, %v753
    %vm761 = vcmp.eq.f32.partialorder %v708, %v753
    %vm762 = vcmp.eq.f32.partialorder %v713, %v753
    %vm763 = vcmp.eq.f32.partialorder %v718, %v753
    %vm764 = vcmp.eq.f32.partialorder %v723, %v753
    %vm765 = vcmp.eq.f32.partialorder %v728, %v753
    %vm766 = vcmp.eq.f32.partialorder %v733, %v753
    %vm767 = vcmp.eq.f32.partialorder %v738, %v753
    %vm768 = vcmp.eq.f32.partialorder %v743, %v753
    %vm769 = vcmp.eq.f32.partialorder %v748, %v753
    %v770 = vsel %vm754, 0.999, 0.001
    %v771 = vsel %vm755, 0.999, 0.001
    %v772 = vsel %vm756, 0.999, 0.001
    %v773 = vsel %vm757, 0.999, 0.001
    %v774 = vsel %vm758, 0.999, 0.001
    %v775 = vsel %vm759, 0.999, 0.001
    %v776 = vsel %vm760, 0.999, 0.001
    %v777 = vsel %vm761, 0.999, 0.001
    %v778 = vsel %vm762, 0.999, 0.001
    %v779 = vsel %vm763, 0.999, 0.001
    %v780 = vsel %vm764, 0.999, 0.001
    %v781 = vsel %vm765, 0.999, 0.001
    %v782 = vsel %vm766, 0.999, 0.001
    %v783 = vsel %vm767, 0.999, 0.001
    %v784 = vsel %vm768, 0.999, 0.001
    %v785 = vsel %vm769, 0.999, 0.001
    %v786 = vadd.f32 %v636, %v637
    %v787 = vadd.f32 %v786, %v638
    %v788 = vadd.f32 %v787, %v639
    %v789 = vadd.f32 %v788, %v640
    %v790 = vadd.f32 %v789, %v641
    %v791 = vadd.f32 %v790, %v642
    %v792 = vadd.f32 %v791, %v643
    %v793 = vadd.f32 %v792, %v644
    %v794 = vadd.f32 %v793, %v645
    %v795 = vadd.f32 %v794, %v646
    %v796 = vadd.f32 %v795, %v647
    %v797 = vadd.f32 %v796, %v648
    %v798 = vadd.f32 %v797, %v649
    %v799 = vadd.f32 %v798, %v650
    %v800 = vadd.f32 %v799, %v651
    %v801 = vrot.slane %v800, 4
    %v802 = vadd.f32 %v800, %v801
    %v803 = vrot.slane %v802, 2
    %v804 = vadd.f32 %v802, %v803
    %v805 = vrot.slane %v804, 1
    %v806 = vadd.f32 %v804, %v805
    %v807 = vrcp.pop %v806
    %v808 = vmul.f32 %v806, %v807
    %v809 = vsub.f32 2.0, %v808
    %v810 = vmul.f32 %v807, %v809
    %s811 = sld [smem:[#allocation2 + $0x2]]
    %s812 = ssub.f32 1.0, %s811
    %v813 = vstv %s812
    %v814 = vmul.f32 %v813, %v810
    %v815 = vmul.f32 %v636, %v814
    %v816 = vmul.f32 %v637, %v814
    %v817 = vmul.f32 %v638, %v814
    %v818 = vmul.f32 %v639, %v814
    %v819 = vmul.f32 %v640, %v814
    %v820 = vmul.f32 %v641, %v814
    %v821 = vmul.f32 %v642, %v814
    %v822 = vmul.f32 %v643, %v814
    %v823 = vmul.f32 %v644, %v814
    %v824 = vmul.f32 %v645, %v814
    %v825 = vmul.f32 %v646, %v814
    %v826 = vmul.f32 %v647, %v814
    %v827 = vmul.f32 %v648, %v814
    %v828 = vmul.f32 %v649, %v814
    %v829 = vmul.f32 %v650, %v814
    %v830 = vmul.f32 %v651, %v814
    %v831 = vstv %s811
    %v832 = vmul.f32 %v831, %v31
    %v833 = vmul.f32 %v831, %v32
    %v834 = vmul.f32 %v831, %v33
    %v835 = vmul.f32 %v831, %v34
    %v836 = vmul.f32 %v831, %v35
    %v837 = vmul.f32 %v831, %v36
    %v838 = vmul.f32 %v831, %v37
    %v839 = vmul.f32 %v831, %v38
    %v840 = vmul.f32 %v831, %v39
    %v841 = vmul.f32 %v831, %v40
    %v842 = vmul.f32 %v831, %v41
    %v843 = vmul.f32 %v831, %v42
    %v844 = vmul.f32 %v831, %v43
    %v845 = vmul.f32 %v831, %v44
    %v846 = vmul.f32 %v831, %v45
    %v847 = vmul.f32 %v831, %v46
    %v848 = vadd.f32 %v815, %v832
    %v849 = vadd.f32 %v816, %v833
    %v850 = vadd.f32 %v817, %v834
    %v851 = vadd.f32 %v818, %v835
    %v852 = vadd.f32 %v819, %v836
    %v853 = vadd.f32 %v820, %v837
    %v854 = vadd.f32 %v821, %v838
    %v855 = vadd.f32 %v822, %v839
    %v856 = vadd.f32 %v823, %v840
    %v857 = vadd.f32 %v824, %v841
    %v858 = vadd.f32 %v825, %v842
    %v859 = vadd.f32 %v826, %v843
    %v860 = vadd.f32 %v827, %v844
    %v861 = vadd.f32 %v828, %v845
    %v862 = vadd.f32 %v829, %v846
    %v863 = vadd.f32 %v830, %v847
    %v864 = vmul.f32 %v770, %v848
    %v865 = vmul.f32 %v771, %v849
    %v866 = vmul.f32 %v772, %v850
    %v867 = vmul.f32 %v773, %v851
    %v868 = vmul.f32 %v774, %v852
    %v869 = vmul.f32 %v775, %v853
    %v870 = vmul.f32 %v776, %v854
    %v871 = vmul.f32 %v777, %v855
    %v872 = vmul.f32 %v778, %v856
    %v873 = vmul.f32 %v779, %v857
    %v874 = vmul.f32 %v780, %v858
    %v875 = vmul.f32 %v781, %v859
    %v876 = vmul.f32 %v782, %v860
    %v877 = vmul.f32 %v783, %v861
    %v878 = vmul.f32 %v784, %v862
    %v879 = vmul.f32 %v785, %v863
    %v880 = vld [vmem:[%s1 + $0x4] sm:$0x1]
    %s881 = scalar_lea.vmem %s2, 512
    %v882 = vld [vmem:[%s881] sm:$0xff]
    %v883 = vld [vmem:[%s881 + $0x8] sm:$0xff]
    %v884 = vld [vmem:[%s881 + $0x10] sm:$0xff]
    %v885 = vld [vmem:[%s881 + $0x18] sm:$0xff]
    %v886 = vld [vmem:[%s881 + $0x20] sm:$0xff]
    %v887 = vld [vmem:[%s881 + $0x28] sm:$0xff]
    %v888 = vld [vmem:[%s881 + $0x30] sm:$0xff]
    %v889 = vld [vmem:[%s881 + $0x38] sm:$0xff]
    %v890 = vld [vmem:[%s881 + $0x40] sm:$0xff]
    %v891 = vld [vmem:[%s881 + $0x48] sm:$0xff]
    %v892 = vld [vmem:[%s881 + $0x50] sm:$0xff]
    %v893 = vld [vmem:[%s881 + $0x58] sm:$0xff]
    %v894 = vld [vmem:[%s881 + $0x60] sm:$0xff]
    %v895 = vld [vmem:[%s881 + $0x68] sm:$0xff]
    %v896 = vld [vmem:[%s881 + $0x70] sm:$0xff]
    %v897 = vld [vmem:[%s881 + $0x78] sm:$0xff]
    %899 = vset.pattern.permute.xlu0 0
    %900 = vperm.xlu0 %899, %v882
    %v901 = vpop.permute.xlu0 %900
    %904 = vset.pattern.permute.xlu0 0
    %905 = vperm.xlu0 %904, %v883
    %v906 = vpop.permute.xlu0 %905
    %909 = vset.pattern.permute.xlu0 0
    %910 = vperm.xlu0 %909, %v884
    %v911 = vpop.permute.xlu0 %910
    %914 = vset.pattern.permute.xlu0 0
    %915 = vperm.xlu0 %914, %v885
    %v916 = vpop.permute.xlu0 %915
    %919 = vset.pattern.permute.xlu0 0
    %920 = vperm.xlu0 %919, %v886
    %v921 = vpop.permute.xlu0 %920
    %924 = vset.pattern.permute.xlu0 0
    %925 = vperm.xlu0 %924, %v887
    %v926 = vpop.permute.xlu0 %925
    %929 = vset.pattern.permute.xlu0 0
    %930 = vperm.xlu0 %929, %v888
    %v931 = vpop.permute.xlu0 %930
    %934 = vset.pattern.permute.xlu0 0
    %935 = vperm.xlu0 %934, %v889
    %v936 = vpop.permute.xlu0 %935
    %939 = vset.pattern.permute.xlu0 0
    %940 = vperm.xlu0 %939, %v890
    %v941 = vpop.permute.xlu0 %940
    %944 = vset.pattern.permute.xlu0 0
    %945 = vperm.xlu0 %944, %v891
    %v946 = vpop.permute.xlu0 %945
    %949 = vset.pattern.permute.xlu0 0
    %950 = vperm.xlu0 %949, %v892
    %v951 = vpop.permute.xlu0 %950
    %954 = vset.pattern.permute.xlu0 0
    %955 = vperm.xlu0 %954, %v893
    %v956 = vpop.permute.xlu0 %955
    %959 = vset.pattern.permute.xlu0 0
    %960 = vperm.xlu0 %959, %v894
    %v961 = vpop.permute.xlu0 %960
    %964 = vset.pattern.permute.xlu0 0
    %965 = vperm.xlu0 %964, %v895
    %v966 = vpop.permute.xlu0 %965
    %969 = vset.pattern.permute.xlu0 0
    %970 = vperm.xlu0 %969, %v896
    %v971 = vpop.permute.xlu0 %970
    %974 = vset.pattern.permute.xlu0 0
    %975 = vperm.xlu0 %974, %v897
    %v976 = vpop.permute.xlu0 %975
    %v978 = vlaneseq
    %v979 = vshrl.u32 %v978, 7
    %v980 = vsub.s32 0, %v979
    %v981 = vrot.slane %v880, %v980
    %vm982 = vcmp.eq.f32.partialorder %v901, %v981
    %vm983 = vcmp.eq.f32.partialorder %v906, %v981
    %vm984 = vcmp.eq.f32.partialorder %v911, %v981
    %vm985 = vcmp.eq.f32.partialorder %v916, %v981
    %vm986 = vcmp.eq.f32.partialorder %v921, %v981
    %vm987 = vcmp.eq.f32.partialorder %v926, %v981
    %vm988 = vcmp.eq.f32.partialorder %v931, %v981
    %vm989 = vcmp.eq.f32.partialorder %v936, %v981
    %vm990 = vcmp.eq.f32.partialorder %v941, %v981
    %vm991 = vcmp.eq.f32.partialorder %v946, %v981
    %vm992 = vcmp.eq.f32.partialorder %v951, %v981
    %vm993 = vcmp.eq.f32.partialorder %v956, %v981
    %vm994 = vcmp.eq.f32.partialorder %v961, %v981
    %vm995 = vcmp.eq.f32.partialorder %v966, %v981
    %vm996 = vcmp.eq.f32.partialorder %v971, %v981
    %vm997 = vcmp.eq.f32.partialorder %v976, %v981
    %v998 = vsel %vm982, 0.999, 0.001
    %v999 = vsel %vm983, 0.999, 0.001
    %v1000 = vsel %vm984, 0.999, 0.001
    %v1001 = vsel %vm985, 0.999, 0.001
    %v1002 = vsel %vm986, 0.999, 0.001
    %v1003 = vsel %vm987, 0.999, 0.001
    %v1004 = vsel %vm988, 0.999, 0.001
    %v1005 = vsel %vm989, 0.999, 0.001
    %v1006 = vsel %vm990, 0.999, 0.001
    %v1007 = vsel %vm991, 0.999, 0.001
    %v1008 = vsel %vm992, 0.999, 0.001
    %v1009 = vsel %vm993, 0.999, 0.001
    %v1010 = vsel %vm994, 0.999, 0.001
    %v1011 = vsel %vm995, 0.999, 0.001
    %v1012 = vsel %vm996, 0.999, 0.001
    %v1013 = vsel %vm997, 0.999, 0.001
    %v1014 = vadd.f32 %v864, %v865
    %v1015 = vadd.f32 %v1014, %v866
    %v1016 = vadd.f32 %v1015, %v867
    %v1017 = vadd.f32 %v1016, %v868
    %v1018 = vadd.f32 %v1017, %v869
    %v1019 = vadd.f32 %v1018, %v870
    %v1020 = vadd.f32 %v1019, %v871
    %v1021 = vadd.f32 %v1020, %v872
    %v1022 = vadd.f32 %v1021, %v873
    %v1023 = vadd.f32 %v1022, %v874
    %v1024 = vadd.f32 %v1023, %v875
    %v1025 = vadd.f32 %v1024, %v876
    %v1026 = vadd.f32 %v1025, %v877
    %v1027 = vadd.f32 %v1026, %v878
    %v1028 = vadd.f32 %v1027, %v879
    %v1029 = vrot.slane %v1028, 4
    %v1030 = vadd.f32 %v1028, %v1029
    %v1031 = vrot.slane %v1030, 2
    %v1032 = vadd.f32 %v1030, %v1031
    %v1033 = vrot.slane %v1032, 1
    %v1034 = vadd.f32 %v1032, %v1033
    %v1035 = vrcp.pop %v1034
    %v1036 = vmul.f32 %v1034, %v1035
    %v1037 = vsub.f32 2.0, %v1036
    %v1038 = vmul.f32 %v1035, %v1037
    %s1039 = sld [smem:[#allocation2 + $0x3]]
    %s1040 = ssub.f32 1.0, %s1039
    %v1041 = vstv %s1040
    %v1042 = vmul.f32 %v1041, %v1038
    %v1043 = vmul.f32 %v864, %v1042
    %v1044 = vmul.f32 %v865, %v1042
    %v1045 = vmul.f32 %v866, %v1042
    %v1046 = vmul.f32 %v867, %v1042
    %v1047 = vmul.f32 %v868, %v1042
    %v1048 = vmul.f32 %v869, %v1042
    %v1049 = vmul.f32 %v870, %v1042
    %v1050 = vmul.f32 %v871, %v1042
    %v1051 = vmul.f32 %v872, %v1042
    %v1052 = vmul.f32 %v873, %v1042
    %v1053 = vmul.f32 %v874, %v1042
    %v1054 = vmul.f32 %v875, %v1042
    %v1055 = vmul.f32 %v876, %v1042
    %v1056 = vmul.f32 %v877, %v1042
    %v1057 = vmul.f32 %v878, %v1042
    %v1058 = vmul.f32 %v879, %v1042
    %v1059 = vstv %s1039
    %v1060 = vmul.f32 %v1059, %v31
    %v1061 = vmul.f32 %v1059, %v32
    %v1062 = vmul.f32 %v1059, %v33
    %v1063 = vmul.f32 %v1059, %v34
    %v1064 = vmul.f32 %v1059, %v35
    %v1065 = vmul.f32 %v1059, %v36
    %v1066 = vmul.f32 %v1059, %v37
    %v1067 = vmul.f32 %v1059, %v38
    %v1068 = vmul.f32 %v1059, %v39
    %v1069 = vmul.f32 %v1059, %v40
    %v1070 = vmul.f32 %v1059, %v41
    %v1071 = vmul.f32 %v1059, %v42
    %v1072 = vmul.f32 %v1059, %v43
    %v1073 = vmul.f32 %v1059, %v44
    %v1074 = vmul.f32 %v1059, %v45
    %v1075 = vmul.f32 %v1059, %v46
    %v1076 = vadd.f32 %v1043, %v1060
    %v1077 = vadd.f32 %v1044, %v1061
    %v1078 = vadd.f32 %v1045, %v1062
    %v1079 = vadd.f32 %v1046, %v1063
    %v1080 = vadd.f32 %v1047, %v1064
    %v1081 = vadd.f32 %v1048, %v1065
    %v1082 = vadd.f32 %v1049, %v1066
    %v1083 = vadd.f32 %v1050, %v1067
    %v1084 = vadd.f32 %v1051, %v1068
    %v1085 = vadd.f32 %v1052, %v1069
    %v1086 = vadd.f32 %v1053, %v1070
    %v1087 = vadd.f32 %v1054, %v1071
    %v1088 = vadd.f32 %v1055, %v1072
    %v1089 = vadd.f32 %v1056, %v1073
    %v1090 = vadd.f32 %v1057, %v1074
    %v1091 = vadd.f32 %v1058, %v1075
    %v1092 = vmul.f32 %v998, %v1076
    %v1093 = vmul.f32 %v999, %v1077
    %v1094 = vmul.f32 %v1000, %v1078
    %v1095 = vmul.f32 %v1001, %v1079
    %v1096 = vmul.f32 %v1002, %v1080
    %v1097 = vmul.f32 %v1003, %v1081
    %v1098 = vmul.f32 %v1004, %v1082
    %v1099 = vmul.f32 %v1005, %v1083
    %v1100 = vmul.f32 %v1006, %v1084
    %v1101 = vmul.f32 %v1007, %v1085
    %v1102 = vmul.f32 %v1008, %v1086
    %v1103 = vmul.f32 %v1009, %v1087
    %v1104 = vmul.f32 %v1010, %v1088
    %v1105 = vmul.f32 %v1011, %v1089
    %v1106 = vmul.f32 %v1012, %v1090
    %v1107 = vmul.f32 %v1013, %v1091
    %v1108 = vld [vmem:[%s1 + $0x5] sm:$0x1]
    %s1109 = scalar_lea.vmem %s2, 640
    %v1110 = vld [vmem:[%s1109] sm:$0xff]
    %v1111 = vld [vmem:[%s1109 + $0x8] sm:$0xff]
    %v1112 = vld [vmem:[%s1109 + $0x10] sm:$0xff]
    %v1113 = vld [vmem:[%s1109 + $0x18] sm:$0xff]
    %v1114 = vld [vmem:[%s1109 + $0x20] sm:$0xff]
    %v1115 = vld [vmem:[%s1109 + $0x28] sm:$0xff]
    %v1116 = vld [vmem:[%s1109 + $0x30] sm:$0xff]
    %v1117 = vld [vmem:[%s1109 + $0x38] sm:$0xff]
    %v1118 = vld [vmem:[%s1109 + $0x40] sm:$0xff]
    %v1119 = vld [vmem:[%s1109 + $0x48] sm:$0xff]
    %v1120 = vld [vmem:[%s1109 + $0x50] sm:$0xff]
    %v1121 = vld [vmem:[%s1109 + $0x58] sm:$0xff]
    %v1122 = vld [vmem:[%s1109 + $0x60] sm:$0xff]
    %v1123 = vld [vmem:[%s1109 + $0x68] sm:$0xff]
    %v1124 = vld [vmem:[%s1109 + $0x70] sm:$0xff]
    %v1125 = vld [vmem:[%s1109 + $0x78] sm:$0xff]
    %1127 = vset.pattern.permute.xlu0 0
    %1128 = vperm.xlu0 %1127, %v1110
    %v1129 = vpop.permute.xlu0 %1128
    %1132 = vset.pattern.permute.xlu0 0
    %1133 = vperm.xlu0 %1132, %v1111
    %v1134 = vpop.permute.xlu0 %1133
    %1137 = vset.pattern.permute.xlu0 0
    %1138 = vperm.xlu0 %1137, %v1112
    %v1139 = vpop.permute.xlu0 %1138
    %1142 = vset.pattern.permute.xlu0 0
    %1143 = vperm.xlu0 %1142, %v1113
    %v1144 = vpop.permute.xlu0 %1143
    %1147 = vset.pattern.permute.xlu0 0
    %1148 = vperm.xlu0 %1147, %v1114
    %v1149 = vpop.permute.xlu0 %1148
    %1152 = vset.pattern.permute.xlu0 0
    %1153 = vperm.xlu0 %1152, %v1115
    %v1154 = vpop.permute.xlu0 %1153
    %1157 = vset.pattern.permute.xlu0 0
    %1158 = vperm.xlu0 %1157, %v1116
    %v1159 = vpop.permute.xlu0 %1158
    %1162 = vset.pattern.permute.xlu0 0
    %1163 = vperm.xlu0 %1162, %v1117
    %v1164 = vpop.permute.xlu0 %1163
    %1167 = vset.pattern.permute.xlu0 0
    %1168 = vperm.xlu0 %1167, %v1118
    %v1169 = vpop.permute.xlu0 %1168
    %1172 = vset.pattern.permute.xlu0 0
    %1173 = vperm.xlu0 %1172, %v1119
    %v1174 = vpop.permute.xlu0 %1173
    %1177 = vset.pattern.permute.xlu0 0
    %1178 = vperm.xlu0 %1177, %v1120
    %v1179 = vpop.permute.xlu0 %1178
    %1182 = vset.pattern.permute.xlu0 0
    %1183 = vperm.xlu0 %1182, %v1121
    %v1184 = vpop.permute.xlu0 %1183
    %1187 = vset.pattern.permute.xlu0 0
    %1188 = vperm.xlu0 %1187, %v1122
    %v1189 = vpop.permute.xlu0 %1188
    %1192 = vset.pattern.permute.xlu0 0
    %1193 = vperm.xlu0 %1192, %v1123
    %v1194 = vpop.permute.xlu0 %1193
    %1197 = vset.pattern.permute.xlu0 0
    %1198 = vperm.xlu0 %1197, %v1124
    %v1199 = vpop.permute.xlu0 %1198
    %1202 = vset.pattern.permute.xlu0 0
    %1203 = vperm.xlu0 %1202, %v1125
    %v1204 = vpop.permute.xlu0 %1203
    %v1206 = vlaneseq
    %v1207 = vshrl.u32 %v1206, 7
    %v1208 = vsub.s32 0, %v1207
    %v1209 = vrot.slane %v1108, %v1208
    %vm1210 = vcmp.eq.f32.partialorder %v1129, %v1209
    %vm1211 = vcmp.eq.f32.partialorder %v1134, %v1209
    %vm1212 = vcmp.eq.f32.partialorder %v1139, %v1209
    %vm1213 = vcmp.eq.f32.partialorder %v1144, %v1209
    %vm1214 = vcmp.eq.f32.partialorder %v1149, %v1209
    %vm1215 = vcmp.eq.f32.partialorder %v1154, %v1209
    %vm1216 = vcmp.eq.f32.partialorder %v1159, %v1209
    %vm1217 = vcmp.eq.f32.partialorder %v1164, %v1209
    %vm1218 = vcmp.eq.f32.partialorder %v1169, %v1209
    %vm1219 = vcmp.eq.f32.partialorder %v1174, %v1209
    %vm1220 = vcmp.eq.f32.partialorder %v1179, %v1209
    %vm1221 = vcmp.eq.f32.partialorder %v1184, %v1209
    %vm1222 = vcmp.eq.f32.partialorder %v1189, %v1209
    %vm1223 = vcmp.eq.f32.partialorder %v1194, %v1209
    %vm1224 = vcmp.eq.f32.partialorder %v1199, %v1209
    %vm1225 = vcmp.eq.f32.partialorder %v1204, %v1209
    %v1226 = vsel %vm1210, 0.999, 0.001
    %v1227 = vsel %vm1211, 0.999, 0.001
    %v1228 = vsel %vm1212, 0.999, 0.001
    %v1229 = vsel %vm1213, 0.999, 0.001
    %v1230 = vsel %vm1214, 0.999, 0.001
    %v1231 = vsel %vm1215, 0.999, 0.001
    %v1232 = vsel %vm1216, 0.999, 0.001
    %v1233 = vsel %vm1217, 0.999, 0.001
    %v1234 = vsel %vm1218, 0.999, 0.001
    %v1235 = vsel %vm1219, 0.999, 0.001
    %v1236 = vsel %vm1220, 0.999, 0.001
    %v1237 = vsel %vm1221, 0.999, 0.001
    %v1238 = vsel %vm1222, 0.999, 0.001
    %v1239 = vsel %vm1223, 0.999, 0.001
    %v1240 = vsel %vm1224, 0.999, 0.001
    %v1241 = vsel %vm1225, 0.999, 0.001
    %v1242 = vadd.f32 %v1092, %v1093
    %v1243 = vadd.f32 %v1242, %v1094
    %v1244 = vadd.f32 %v1243, %v1095
    %v1245 = vadd.f32 %v1244, %v1096
    %v1246 = vadd.f32 %v1245, %v1097
    %v1247 = vadd.f32 %v1246, %v1098
    %v1248 = vadd.f32 %v1247, %v1099
    %v1249 = vadd.f32 %v1248, %v1100
    %v1250 = vadd.f32 %v1249, %v1101
    %v1251 = vadd.f32 %v1250, %v1102
    %v1252 = vadd.f32 %v1251, %v1103
    %v1253 = vadd.f32 %v1252, %v1104
    %v1254 = vadd.f32 %v1253, %v1105
    %v1255 = vadd.f32 %v1254, %v1106
    %v1256 = vadd.f32 %v1255, %v1107
    %v1257 = vrot.slane %v1256, 4
    %v1258 = vadd.f32 %v1256, %v1257
    %v1259 = vrot.slane %v1258, 2
    %v1260 = vadd.f32 %v1258, %v1259
    %v1261 = vrot.slane %v1260, 1
    %v1262 = vadd.f32 %v1260, %v1261
    %v1263 = vrcp.pop %v1262
    %v1264 = vmul.f32 %v1262, %v1263
    %v1265 = vsub.f32 2.0, %v1264
    %v1266 = vmul.f32 %v1263, %v1265
    %s1267 = sld [smem:[#allocation2 + $0x4]]
    %s1268 = ssub.f32 1.0, %s1267
    %v1269 = vstv %s1268
    %v1270 = vmul.f32 %v1269, %v1266
    %v1271 = vmul.f32 %v1092, %v1270
    %v1272 = vmul.f32 %v1093, %v1270
    %v1273 = vmul.f32 %v1094, %v1270
    %v1274 = vmul.f32 %v1095, %v1270
    %v1275 = vmul.f32 %v1096, %v1270
    %v1276 = vmul.f32 %v1097, %v1270
    %v1277 = vmul.f32 %v1098, %v1270
    %v1278 = vmul.f32 %v1099, %v1270
    %v1279 = vmul.f32 %v1100, %v1270
    %v1280 = vmul.f32 %v1101, %v1270
    %v1281 = vmul.f32 %v1102, %v1270
    %v1282 = vmul.f32 %v1103, %v1270
    %v1283 = vmul.f32 %v1104, %v1270
    %v1284 = vmul.f32 %v1105, %v1270
    %v1285 = vmul.f32 %v1106, %v1270
    %v1286 = vmul.f32 %v1107, %v1270
    %v1287 = vstv %s1267
    %v1288 = vmul.f32 %v1287, %v31
    %v1289 = vmul.f32 %v1287, %v32
    %v1290 = vmul.f32 %v1287, %v33
    %v1291 = vmul.f32 %v1287, %v34
    %v1292 = vmul.f32 %v1287, %v35
    %v1293 = vmul.f32 %v1287, %v36
    %v1294 = vmul.f32 %v1287, %v37
    %v1295 = vmul.f32 %v1287, %v38
    %v1296 = vmul.f32 %v1287, %v39
    %v1297 = vmul.f32 %v1287, %v40
    %v1298 = vmul.f32 %v1287, %v41
    %v1299 = vmul.f32 %v1287, %v42
    %v1300 = vmul.f32 %v1287, %v43
    %v1301 = vmul.f32 %v1287, %v44
    %v1302 = vmul.f32 %v1287, %v45
    %v1303 = vmul.f32 %v1287, %v46
    %v1304 = vadd.f32 %v1271, %v1288
    %v1305 = vadd.f32 %v1272, %v1289
    %v1306 = vadd.f32 %v1273, %v1290
    %v1307 = vadd.f32 %v1274, %v1291
    %v1308 = vadd.f32 %v1275, %v1292
    %v1309 = vadd.f32 %v1276, %v1293
    %v1310 = vadd.f32 %v1277, %v1294
    %v1311 = vadd.f32 %v1278, %v1295
    %v1312 = vadd.f32 %v1279, %v1296
    %v1313 = vadd.f32 %v1280, %v1297
    %v1314 = vadd.f32 %v1281, %v1298
    %v1315 = vadd.f32 %v1282, %v1299
    %v1316 = vadd.f32 %v1283, %v1300
    %v1317 = vadd.f32 %v1284, %v1301
    %v1318 = vadd.f32 %v1285, %v1302
    %v1319 = vadd.f32 %v1286, %v1303
    %v1320 = vmul.f32 %v1226, %v1304
    %v1321 = vmul.f32 %v1227, %v1305
    %v1322 = vmul.f32 %v1228, %v1306
    %v1323 = vmul.f32 %v1229, %v1307
    %v1324 = vmul.f32 %v1230, %v1308
    %v1325 = vmul.f32 %v1231, %v1309
    %v1326 = vmul.f32 %v1232, %v1310
    %v1327 = vmul.f32 %v1233, %v1311
    %v1328 = vmul.f32 %v1234, %v1312
    %v1329 = vmul.f32 %v1235, %v1313
    %v1330 = vmul.f32 %v1236, %v1314
    %v1331 = vmul.f32 %v1237, %v1315
    %v1332 = vmul.f32 %v1238, %v1316
    %v1333 = vmul.f32 %v1239, %v1317
    %v1334 = vmul.f32 %v1240, %v1318
    %v1335 = vmul.f32 %v1241, %v1319
    %v1336 = vld [vmem:[%s1 + $0x6] sm:$0x1]
    %s1337 = scalar_lea.vmem %s2, 768
    %v1338 = vld [vmem:[%s1337] sm:$0xff]
    %v1339 = vld [vmem:[%s1337 + $0x8] sm:$0xff]
    %v1340 = vld [vmem:[%s1337 + $0x10] sm:$0xff]
    %v1341 = vld [vmem:[%s1337 + $0x18] sm:$0xff]
    %v1342 = vld [vmem:[%s1337 + $0x20] sm:$0xff]
    %v1343 = vld [vmem:[%s1337 + $0x28] sm:$0xff]
    %v1344 = vld [vmem:[%s1337 + $0x30] sm:$0xff]
    %v1345 = vld [vmem:[%s1337 + $0x38] sm:$0xff]
    %v1346 = vld [vmem:[%s1337 + $0x40] sm:$0xff]
    %v1347 = vld [vmem:[%s1337 + $0x48] sm:$0xff]
    %v1348 = vld [vmem:[%s1337 + $0x50] sm:$0xff]
    %v1349 = vld [vmem:[%s1337 + $0x58] sm:$0xff]
    %v1350 = vld [vmem:[%s1337 + $0x60] sm:$0xff]
    %v1351 = vld [vmem:[%s1337 + $0x68] sm:$0xff]
    %v1352 = vld [vmem:[%s1337 + $0x70] sm:$0xff]
    %v1353 = vld [vmem:[%s1337 + $0x78] sm:$0xff]
    %1355 = vset.pattern.permute.xlu0 0
    %1356 = vperm.xlu0 %1355, %v1338
    %v1357 = vpop.permute.xlu0 %1356
    %1360 = vset.pattern.permute.xlu0 0
    %1361 = vperm.xlu0 %1360, %v1339
    %v1362 = vpop.permute.xlu0 %1361
    %1365 = vset.pattern.permute.xlu0 0
    %1366 = vperm.xlu0 %1365, %v1340
    %v1367 = vpop.permute.xlu0 %1366
    %1370 = vset.pattern.permute.xlu0 0
    %1371 = vperm.xlu0 %1370, %v1341
    %v1372 = vpop.permute.xlu0 %1371
    %1375 = vset.pattern.permute.xlu0 0
    %1376 = vperm.xlu0 %1375, %v1342
    %v1377 = vpop.permute.xlu0 %1376
    %1380 = vset.pattern.permute.xlu0 0
    %1381 = vperm.xlu0 %1380, %v1343
    %v1382 = vpop.permute.xlu0 %1381
    %1385 = vset.pattern.permute.xlu0 0
    %1386 = vperm.xlu0 %1385, %v1344
    %v1387 = vpop.permute.xlu0 %1386
    %1390 = vset.pattern.permute.xlu0 0
    %1391 = vperm.xlu0 %1390, %v1345
    %v1392 = vpop.permute.xlu0 %1391
    %1395 = vset.pattern.permute.xlu0 0
    %1396 = vperm.xlu0 %1395, %v1346
    %v1397 = vpop.permute.xlu0 %1396
    %1400 = vset.pattern.permute.xlu0 0
    %1401 = vperm.xlu0 %1400, %v1347
    %v1402 = vpop.permute.xlu0 %1401
    %1405 = vset.pattern.permute.xlu0 0
    %1406 = vperm.xlu0 %1405, %v1348
    %v1407 = vpop.permute.xlu0 %1406
    %1410 = vset.pattern.permute.xlu0 0
    %1411 = vperm.xlu0 %1410, %v1349
    %v1412 = vpop.permute.xlu0 %1411
    %1415 = vset.pattern.permute.xlu0 0
    %1416 = vperm.xlu0 %1415, %v1350
    %v1417 = vpop.permute.xlu0 %1416
    %1420 = vset.pattern.permute.xlu0 0
    %1421 = vperm.xlu0 %1420, %v1351
    %v1422 = vpop.permute.xlu0 %1421
    %1425 = vset.pattern.permute.xlu0 0
    %1426 = vperm.xlu0 %1425, %v1352
    %v1427 = vpop.permute.xlu0 %1426
    %1430 = vset.pattern.permute.xlu0 0
    %1431 = vperm.xlu0 %1430, %v1353
    %v1432 = vpop.permute.xlu0 %1431
    %v1434 = vlaneseq
    %v1435 = vshrl.u32 %v1434, 7
    %v1436 = vsub.s32 0, %v1435
    %v1437 = vrot.slane %v1336, %v1436
    %vm1438 = vcmp.eq.f32.partialorder %v1357, %v1437
    %vm1439 = vcmp.eq.f32.partialorder %v1362, %v1437
    %vm1440 = vcmp.eq.f32.partialorder %v1367, %v1437
    %vm1441 = vcmp.eq.f32.partialorder %v1372, %v1437
    %vm1442 = vcmp.eq.f32.partialorder %v1377, %v1437
    %vm1443 = vcmp.eq.f32.partialorder %v1382, %v1437
    %vm1444 = vcmp.eq.f32.partialorder %v1387, %v1437
    %vm1445 = vcmp.eq.f32.partialorder %v1392, %v1437
    %vm1446 = vcmp.eq.f32.partialorder %v1397, %v1437
    %vm1447 = vcmp.eq.f32.partialorder %v1402, %v1437
    %vm1448 = vcmp.eq.f32.partialorder %v1407, %v1437
    %vm1449 = vcmp.eq.f32.partialorder %v1412, %v1437
    %vm1450 = vcmp.eq.f32.partialorder %v1417, %v1437
    %vm1451 = vcmp.eq.f32.partialorder %v1422, %v1437
    %vm1452 = vcmp.eq.f32.partialorder %v1427, %v1437
    %vm1453 = vcmp.eq.f32.partialorder %v1432, %v1437
    %v1454 = vsel %vm1438, 0.999, 0.001
    %v1455 = vsel %vm1439, 0.999, 0.001
    %v1456 = vsel %vm1440, 0.999, 0.001
    %v1457 = vsel %vm1441, 0.999, 0.001
    %v1458 = vsel %vm1442, 0.999, 0.001
    %v1459 = vsel %vm1443, 0.999, 0.001
    %v1460 = vsel %vm1444, 0.999, 0.001
    %v1461 = vsel %vm1445, 0.999, 0.001
    %v1462 = vsel %vm1446, 0.999, 0.001
    %v1463 = vsel %vm1447, 0.999, 0.001
    %v1464 = vsel %vm1448, 0.999, 0.001
    %v1465 = vsel %vm1449, 0.999, 0.001
    %v1466 = vsel %vm1450, 0.999, 0.001
    %v1467 = vsel %vm1451, 0.999, 0.001
    %v1468 = vsel %vm1452, 0.999, 0.001
    %v1469 = vsel %vm1453, 0.999, 0.001
    %v1470 = vadd.f32 %v1320, %v1321
    %v1471 = vadd.f32 %v1470, %v1322
    %v1472 = vadd.f32 %v1471, %v1323
    %v1473 = vadd.f32 %v1472, %v1324
    %v1474 = vadd.f32 %v1473, %v1325
    %v1475 = vadd.f32 %v1474, %v1326
    %v1476 = vadd.f32 %v1475, %v1327
    %v1477 = vadd.f32 %v1476, %v1328
    %v1478 = vadd.f32 %v1477, %v1329
    %v1479 = vadd.f32 %v1478, %v1330
    %v1480 = vadd.f32 %v1479, %v1331
    %v1481 = vadd.f32 %v1480, %v1332
    %v1482 = vadd.f32 %v1481, %v1333
    %v1483 = vadd.f32 %v1482, %v1334
    %v1484 = vadd.f32 %v1483, %v1335
    %v1485 = vrot.slane %v1484, 4
    %v1486 = vadd.f32 %v1484, %v1485
    %v1487 = vrot.slane %v1486, 2
    %v1488 = vadd.f32 %v1486, %v1487
    %v1489 = vrot.slane %v1488, 1
    %v1490 = vadd.f32 %v1488, %v1489
    %v1491 = vrcp.pop %v1490
    %v1492 = vmul.f32 %v1490, %v1491
    %v1493 = vsub.f32 2.0, %v1492
    %v1494 = vmul.f32 %v1491, %v1493
    %s1495 = sld [smem:[#allocation2 + $0x5]]
    %s1496 = ssub.f32 1.0, %s1495
    %v1497 = vstv %s1496
    %v1498 = vmul.f32 %v1497, %v1494
    %v1499 = vmul.f32 %v1320, %v1498
    %v1500 = vmul.f32 %v1321, %v1498
    %v1501 = vmul.f32 %v1322, %v1498
    %v1502 = vmul.f32 %v1323, %v1498
    %v1503 = vmul.f32 %v1324, %v1498
    %v1504 = vmul.f32 %v1325, %v1498
    %v1505 = vmul.f32 %v1326, %v1498
    %v1506 = vmul.f32 %v1327, %v1498
    %v1507 = vmul.f32 %v1328, %v1498
    %v1508 = vmul.f32 %v1329, %v1498
    %v1509 = vmul.f32 %v1330, %v1498
    %v1510 = vmul.f32 %v1331, %v1498
    %v1511 = vmul.f32 %v1332, %v1498
    %v1512 = vmul.f32 %v1333, %v1498
    %v1513 = vmul.f32 %v1334, %v1498
    %v1514 = vmul.f32 %v1335, %v1498
    %v1515 = vstv %s1495
    %v1516 = vmul.f32 %v1515, %v31
    %v1517 = vmul.f32 %v1515, %v32
    %v1518 = vmul.f32 %v1515, %v33
    %v1519 = vmul.f32 %v1515, %v34
    %v1520 = vmul.f32 %v1515, %v35
    %v1521 = vmul.f32 %v1515, %v36
    %v1522 = vmul.f32 %v1515, %v37
    %v1523 = vmul.f32 %v1515, %v38
    %v1524 = vmul.f32 %v1515, %v39
    %v1525 = vmul.f32 %v1515, %v40
    %v1526 = vmul.f32 %v1515, %v41
    %v1527 = vmul.f32 %v1515, %v42
    %v1528 = vmul.f32 %v1515, %v43
    %v1529 = vmul.f32 %v1515, %v44
    %v1530 = vmul.f32 %v1515, %v45
    %v1531 = vmul.f32 %v1515, %v46
    %v1532 = vadd.f32 %v1499, %v1516
    %v1533 = vadd.f32 %v1500, %v1517
    %v1534 = vadd.f32 %v1501, %v1518
    %v1535 = vadd.f32 %v1502, %v1519
    %v1536 = vadd.f32 %v1503, %v1520
    %v1537 = vadd.f32 %v1504, %v1521
    %v1538 = vadd.f32 %v1505, %v1522
    %v1539 = vadd.f32 %v1506, %v1523
    %v1540 = vadd.f32 %v1507, %v1524
    %v1541 = vadd.f32 %v1508, %v1525
    %v1542 = vadd.f32 %v1509, %v1526
    %v1543 = vadd.f32 %v1510, %v1527
    %v1544 = vadd.f32 %v1511, %v1528
    %v1545 = vadd.f32 %v1512, %v1529
    %v1546 = vadd.f32 %v1513, %v1530
    %v1547 = vadd.f32 %v1514, %v1531
    %v1548 = vmul.f32 %v1454, %v1532
    %v1549 = vmul.f32 %v1455, %v1533
    %v1550 = vmul.f32 %v1456, %v1534
    %v1551 = vmul.f32 %v1457, %v1535
    %v1552 = vmul.f32 %v1458, %v1536
    %v1553 = vmul.f32 %v1459, %v1537
    %v1554 = vmul.f32 %v1460, %v1538
    %v1555 = vmul.f32 %v1461, %v1539
    %v1556 = vmul.f32 %v1462, %v1540
    %v1557 = vmul.f32 %v1463, %v1541
    %v1558 = vmul.f32 %v1464, %v1542
    %v1559 = vmul.f32 %v1465, %v1543
    %v1560 = vmul.f32 %v1466, %v1544
    %v1561 = vmul.f32 %v1467, %v1545
    %v1562 = vmul.f32 %v1468, %v1546
    %v1563 = vmul.f32 %v1469, %v1547
    %1564 = vst [vmem:[#allocation5] sm:$0xff] %v1548
    %1565 = vst [vmem:[#allocation5 + $0x8] sm:$0xff] %v1549
    %1566 = vst [vmem:[#allocation5 + $0x10] sm:$0xff] %v1550
    %1567 = vst [vmem:[#allocation5 + $0x18] sm:$0xff] %v1551
    %1568 = vst [vmem:[#allocation5 + $0x20] sm:$0xff] %v1552
    %1569 = vst [vmem:[#allocation5 + $0x28] sm:$0xff] %v1553
    %1570 = vst [vmem:[#allocation5 + $0x30] sm:$0xff] %v1554
    %1571 = vst [vmem:[#allocation5 + $0x38] sm:$0xff] %v1555
    %1572 = vst [vmem:[#allocation5 + $0x40] sm:$0xff] %v1556
    %1573 = vst [vmem:[#allocation5 + $0x48] sm:$0xff] %v1557
    %1574 = vst [vmem:[#allocation5 + $0x50] sm:$0xff] %v1558
    %1575 = vst [vmem:[#allocation5 + $0x58] sm:$0xff] %v1559
    %1576 = vst [vmem:[#allocation5 + $0x60] sm:$0xff] %v1560
    %1577 = vst [vmem:[#allocation5 + $0x68] sm:$0xff] %v1561
    %1578 = vst [vmem:[#allocation5 + $0x70] sm:$0xff] %v1562
    %1579 = vst [vmem:[#allocation5 + $0x78] sm:$0xff] %v1563
    // Predicated region
    $region22: #{listephens_forward.1} parent=1 // pred_check
      _
    $region23: #{listephens_forward.1} parent=1 // pred_check_branch
      %1581 = sbr.rel (0) target = $region25
    $region24: #{listephens_forward.1} parent=1 // pred_region
      %s1583 = ssub.s32 2048, 2048
      %1584 = vsyncadd [#allocation3], %s1583
      %s1585 = sshll.u32 [#allocation5], 4
      %s1586 = int_to_ptr.vmem [resolvable:$true] %s1585
      %1591 = dma.vmem_to_hbm [thread:$0]  %s1586, 2048, %s4, [#allocation3], 128, 128, 8
    $region25: #{listephens_forward.1} parent=1 // pred_fallthru
      _
    // Predicated region
    $region26: #{listephens_forward.1} parent=1 // pred_check
      _
    $region27: #{listephens_forward.1} parent=1 // pred_check_branch
      %1593 = sbr.rel (0) target = $region29
    $region28: #{listephens_forward.1} parent=1 // pred_region
      %1594 = dma.done [#allocation3], 2048
    $region29: #{listephens_forward.1} parent=1 // pred_fallthru
      _
    %1595 = vsyncpa [#allocation3], 1
    %1596 = vsyncpa [#allocation4], 1

</llo_original>
